<compile_context>
chip_gen: v7x
topology: tpu7x:2x2x1
jax: 0.10.0
libtpu: 0.0.40
codegen_flags: <defaults>
</compile_context>

<pallas_src>
import functools

import numpy as np
import jax
import jax.numpy as jnp
from jax import lax
from jax.experimental import pallas as pl
from jax.experimental.pallas import tpu as pltpu


BF16_ACTS = True                                   # bf16 inter-layer activations
ACT_DTYPE = jnp.bfloat16 if BF16_ACTS else jnp.float32


def _tpu_config():
    """(vmem_limit_bytes, num_tensorcores) per chip generation."""
    try:
        kind = jax.devices()[0].device_kind.lower()
    except Exception:
        return 32 * 1024 * 1024, 1
    if ("v5 lite" in kind) or ("v5e" in kind) or ("v6" in kind):
        return 80 * 1024 * 1024, 1                 # 128 MiB VMEM parts
    if "7" in kind:
        return 40 * 1024 * 1024, 2                 # v7x: 64 MiB VMEM, 2 TCs
    return 32 * 1024 * 1024, 1


VMEM_LIMIT, NUM_TC = _tpu_config()


def _round_up(x, m):
    return (x + m - 1) // m * m


def _cparams(sems):
    return pltpu.CompilerParams(dimension_semantics=sems,
                                vmem_limit_bytes=VMEM_LIMIT)


def _row_tiles(M, C, target_bytes=2 << 20):
    """Row-tile for (M, C) activations; >=2 tiles on 2-TC parts when possible."""
    rows = max(8, min(1024, (target_bytes // max(C * 4, 1)) // 8 * 8))
    Mp8 = _round_up(M, 8)
    if Mp8 <= rows:
        if NUM_TC >= 2 and Mp8 >= 16 and Mp8 % 16 == 0:
            return Mp8, Mp8 // 2
        return Mp8, Mp8
    return _round_up(M, rows), rows


def _pick_tm(M):
    Mp = _round_up(M, 8)
    if Mp <= 1024:
        tm = Mp
        if NUM_TC >= 2 and Mp >= 256 and Mp % 16 == 0:
            tm = Mp // 2                           # >=2 blocks for megacore
        return Mp, tm
    tm = 1024
    return _round_up(M, tm), tm


# ----------------------------------------------------------------------------- #
# Matmul (MXU): bf16 operands, f32 accumulation in the output block.
# Optional fused bias (last K step) and fused BN column stats (sum / sumsq).
# ----------------------------------------------------------------------------- #
def _matmul_kernel(*refs, has_bias, want_stats):
    a_ref, b_ref = refs[0], refs[1]
    idx = 2
    bias_ref = None
    if has_bias:
        bias_ref = refs[idx]
        idx += 1
    o_ref = refs[idx]
    idx += 1
    k = pl.program_id(2)
    nk = pl.num_programs(2)

    @pl.when(k == 0)
    def _():
        o_ref[...] = jnp.zeros_like(o_ref)

    o_ref[...] += jnp.dot(a_ref[...], b_ref[...],
                          preferred_element_type=jnp.float32)

    if has_bias:
        @pl.when(k == nk - 1)
        def _():
            o_ref[...] += bias_ref[...]

    if want_stats:
        s_ref, q_ref = refs[idx], refs[idx + 1]

        @pl.when(k == 0)
        def _():
            s_ref[...] = jnp.zeros_like(s_ref)
            q_ref[...] = jnp.zeros_like(q_ref)

        @pl.when(k == nk - 1)
        def _():
            o = o_ref[...]
            s_ref[...] = jnp.sum(o, axis=0).reshape(1, 1, -1)
            q_ref[...] = jnp.sum(o * o, axis=0).reshape(1, 1, -1)


def pallas_matmul(a, b, bias=None, want_stats=False):
    """(M, K) @ (K, N) -> (M, N) f32.  bf16 MXU operands, lane-dense output.
    want_stats additionally returns per-column (sum, sumsq, count)."""
    M, K = a.shape
    K2, N = b.shape
    assert K == K2
    assert not (want_stats and bias is not None)

    Mp, tm = _pick_tm(M)

    if K <= 2048:                          # single full-K block: B fetched once
        Kp, tk = K, K
    elif K % 512 == 0:
        Kp, tk = K, 512
    elif K % 256 == 0:
        Kp, tk = K, 256
    else:
        tk = 128
        Kp = _round_up(K, tk)

    Np = _round_up(N, 128)                 # lane-dense output stores
    if Np <= 1024:
        tn = Np
    elif Np % 256 == 0:
        tn = 256
    else:
        tn = 128

    if a.dtype != jnp.bfloat16:
        a = a.astype(jnp.bfloat16)
    if b.dtype != jnp.bfloat16:
        b = b.astype(jnp.bfloat16)
    if (Mp, Kp) != (M, K):
        a = jnp.pad(a, ((0, Mp - M), (0, Kp - K)))
    if (Kp, Np) != (K, N):
        b = jnp.pad(b, ((0, Kp - K), (0, Np - N)))

    nI, nJ, nK = Mp // tm, Np // tn, Kp // tk

    in_specs = [pl.BlockSpec((tm, tk), lambda i, j, k: (i, k)),
                pl.BlockSpec((tk, tn), lambda i, j, k: (k, j))]
    inputs = [a, b]
    if bias is not None:
        bias2 = jnp.pad(bias.astype(jnp.float32).reshape(1, N),
                        ((0, 0), (0, Np - N)))
        in_specs.append(pl.BlockSpec((1, tn), lambda i, j, k: (0, j)))
        inputs.append(bias2)

    out_shapes = [jax.ShapeDtypeStruct((Mp, Np), jnp.float32)]
    out_specs = [pl.BlockSpec((tm, tn), lambda i, j, k: (i, j))]
    if want_stats:
        st_spec = pl.BlockSpec((1, 1, tn), lambda i, j, k: (i, 0, j))
        out_shapes += [jax.ShapeDtypeStruct((nI, 1, Np), jnp.float32)] * 2
        out_specs += [st_spec, st_spec]

    kern = functools.partial(_matmul_kernel, has_bias=bias is not None,
                             want_stats=want_stats)
    res = pl.pallas_call(
        kern,
        out_shape=tuple(out_shapes) if len(out_shapes) > 1 else out_shapes[0],
        grid_spec=pltpu.PrefetchScalarGridSpec(
            num_scalar_prefetch=0, grid=(nI, nJ, nK),
            in_specs=in_specs,
            out_specs=tuple(out_specs) if len(out_specs) > 1 else out_specs[0]),
        compiler_params=_cparams(("parallel", "parallel", "arbitrary")),
    )(*inputs)

    if want_stats:
        out, s, q = res
        col_sum = s[:, 0, :N].sum(axis=0)
        col_sq = q[:, 0, :N].sum(axis=0)
        if (Mp, Np) != (M, N):
            out = out[:M, :N]
        return out, (col_sum, col_sq, M)

    out = res
    if (Mp, Np) != (M, N):
        out = out[:M, :N]
    return out


# ----------------------------------------------------------------------------- #
# Direct stride-1 3x3 conv: taps folded into the in-kernel reduction.
# The full folded weight (kh, kw*Cin, Cout) stays resident in VMEM; padded NHWC
# rows are streamed via single-row BlockSpecs.  BN stats fused in the epilogue.
# ----------------------------------------------------------------------------- #
def _direct_conv_kernel(*refs, R, kh, kw, cin, dil, W):
    w_ref = refs[0]
    x_refs = refs[1:1 + R * kh]
    o_ref = refs[1 + R * kh]
    s_ref = refs[2 + R * kh]
    q_ref = refs[3 + R * kh]
    cout = o_ref.shape[-1]

    s = jnp.zeros((1, cout), jnp.float32)
    q = jnp.zeros((1, cout), jnp.float32)
    for r in range(R):
        acc = jnp.zeros((W, cout), jnp.float32)
        for dh in range(kh):
            row = x_refs[r * kh + dh]                       # (1, 1, Wp, Cin)
            for dw in range(kw):
                a = row[0, 0, pl.ds(dw * dil, W), :]        # (W, Cin)
                wk = w_ref[dh, pl.ds(dw * cin, cin), :]     # (Cin, Cout)
                acc = acc + jnp.dot(a, wk, preferred_element_type=jnp.float32)
        o_ref[0, r] = acc
        s = s + jnp.sum(acc, axis=0, keepdims=True)
        q = q + jnp.sum(acc * acc, axis=0, keepdims=True)
    s_ref[...] = s.reshape(1, 1, 1, cout)
    q_ref[...] = q.reshape(1, 1, 1, cout)


def _direct_conv3x3(x, w_mat, cout, dil):
    """Stride-1 'same' 3x3 conv (padding == dilation).  Returns
    (out f32 NHWC, (col_sum, col_sq, count)) or None if weights don't fit."""
    N, H, W, cin = x.shape
    kh = kw = 3
    if x.dtype != jnp.bfloat16:
        x = x.astype(jnp.bfloat16)
    xp = jnp.pad(x, ((0, 0), (dil, dil), (dil, dil), (0, 0)))
    Wp = W + 2 * dil
    w3 = w_mat.reshape(kh, kw * cin, cout)                  # bf16, prefolded

    limit = int(VMEM_LIMIT * 0.7)
    R = None
    for cand in (8, 4, 2, 1):
        if H % cand:
            continue
        est = (2 * kh * kw * cin * cout * 2                 # resident weight x2
               + 2 * cand * kh * Wp * cin * 2               # row buffers
               + 2 * cand * W * cout * 4                    # output block
               + (1 << 16))
        if est <= limit:
            R = cand
            break
    if R is None:
        return None
    HB = H // R

    w_spec = pl.BlockSpec((kh, kw * cin, cout), lambda n, hb: (0, 0, 0))
    x_specs = []
    for r in range(R):
        for dh in range(kh):
            x_specs.append(pl.BlockSpec(
                (1, 1, Wp, cin),
                lambda n, hb, r=r, dh=dh, R=R, dil=dil:
                    (n, hb * R + r + dh * dil, 0, 0)))
    o_spec = pl.BlockSpec((1, R, W, cout), lambda n, hb: (n, hb, 0, 0))
    st_spec = pl.BlockSpec((1, 1, 1, cout), lambda n, hb: (n, hb, 0, 0))

    kern = functools.partial(_direct_conv_kernel, R=R, kh=kh, kw=kw,
                             cin=cin, dil=dil, W=W)
    out, s, q = pl.pallas_call(
        kern,
        out_shape=(jax.ShapeDtypeStruct((N, H, W, cout), jnp.float32),
                   jax.ShapeDtypeStruct((N, HB, 1, cout), jnp.float32),
                   jax.ShapeDtypeStruct((N, HB, 1, cout), jnp.float32)),
        grid_spec=pltpu.PrefetchScalarGridSpec(
            num_scalar_prefetch=0, grid=(N, HB),
            in_specs=[w_spec] + x_specs,
            out_specs=(o_spec, st_spec, st_spec)),
        compiler_params=_cparams(("parallel", "parallel")),
    )(w3, *([xp] * (R * kh)))

    col_sum = s.sum(axis=(0, 1, 2))
    col_sq = q.sum(axis=(0, 1, 2))
    return out, (col_sum, col_sq, N * H * W)


# ----------------------------------------------------------------------------- #
# Convolution dispatch (NHWC)
# ----------------------------------------------------------------------------- #
def conv2d(x, w_mat, kh, kw, b=None, stride=1, padding=0, dilation=1,
           want_stats=False):
    """x: (N, H, W, Cin) NHWC.  w_mat: (kh*kw*Cin, Cout) bf16 (prefolded)."""
    N, H, W, Cin = x.shape
    Cout = w_mat.shape[1]

    if kh == 3 and kw == 3 and stride == 1 and padding == dilation and b is None:
        res = _direct_conv3x3(x, w_mat, Cout, dilation)
        if res is not None:
            out, stats = res
            return (out, stats) if want_stats else out

    if kh == 1 and kw == 1 and padding == 0:
        xs = x if stride == 1 else x[:, ::stride, ::stride, :]
        _, Hout, Wout, _ = xs.shape
        patches = xs.reshape(N * Hout * Wout, Cin)
    else:
        # TODO(synk): strided convs (conv1 7x7/s2, layer2 conv2 s2) still build
        # XLA im2col patches; all stride-1 3x3 convs use the direct kernel.
        xp = x
        if padding:
            xp = jnp.pad(x, ((0, 0), (padding, padding), (padding, padding), (0, 0)))
        Hp, Wp = H + 2 * padding, W + 2 * padding
        Hout = (Hp - (dilation * (kh - 1) + 1)) // stride + 1
        Wout = (Wp - (dilation * (kw - 1) + 1)) // stride + 1
        taps = []
        for i in range(kh):
            for j in range(kw):
                hi, wi = i * dilation, j * dilation
                taps.append(xp[:, hi:hi + (Hout - 1) * stride + 1:stride,
                                  wi:wi + (Wout - 1) * stride + 1:stride, :])
        patches = taps[0] if len(taps) == 1 else jnp.concatenate(taps, axis=-1)
        patches = patches.reshape(N * Hout * Wout, kh * kw * Cin)

    res = pallas_matmul(patches, w_mat, bias=b, want_stats=want_stats)
    if want_stats:
        out2, stats = res
        return out2.reshape(N, Hout, Wout, Cout), stats
    return res.reshape(N, Hout, Wout, Cout)


def apply_conv(p, x, stride=1, padding=0, dilation=1):
    return conv2d(x, p["w"], p["kh"], p["kw"], b=p.get("b"),
                  stride=stride, padding=padding, dilation=dilation)


# ----------------------------------------------------------------------------- #
# BatchNorm (train mode): stats come fused from the conv; affine/ReLU/residual
# fused in one tiled pass emitting bf16 activations.
# ----------------------------------------------------------------------------- #
def _affine_kernel(x_ref, s_ref, b_ref, o_ref, *, relu):
    y = x_ref[...] * s_ref[...] + b_ref[...]
    if relu:
        y = jnp.maximum(y, 0.0)
    o_ref[...] = y.astype(o_ref.dtype)


def _affine_residual_kernel(x_ref, s_ref, b_ref, r_ref, o_ref):
    y = x_ref[...] * s_ref[...] + b_ref[...] + r_ref[...].astype(jnp.float32)
    o_ref[...] = jnp.maximum(y, 0.0).astype(o_ref.dtype)


def batch_norm(x, gamma, beta, relu, stats, residual=None, eps=1e-5):
    """Training-mode BatchNorm2d on NHWC activations using pre-reduced batch
    statistics (from the conv epilogue), optionally fused with residual+ReLU."""
    N, H, W, C = x.shape
    M = N * H * W
    col_sum, col_sq, count = stats
    mean = col_sum / count
    var = jnp.maximum(col_sq / count - mean * mean, 0.0)
    inv = lax.rsqrt(var + eps)
    scale = (gamma * inv).reshape(1, C).astype(jnp.float32)
    bias = (beta - mean * gamma * inv).reshape(1, C).astype(jnp.float32)

    x2 = x.reshape(M, C)
    Mp, tm = _row_tiles(M, C)
    if Mp != M:
        x2 = jnp.pad(x2, ((0, Mp - M), (0, 0)))
    row_spec = pl.BlockSpec((tm, C), lambda i: (i, 0))
    col_spec = pl.BlockSpec((1, C), lambda i: (0, 0))

    if residual is None:
        out = pl.pallas_call(
            functools.partial(_affine_kernel, relu=relu),
            out_shape=jax.ShapeDtypeStruct((Mp, C), ACT_DTYPE),
            grid_spec=pltpu.PrefetchScalarGridSpec(
                num_scalar_prefetch=0, grid=(Mp // tm,),
                in_specs=[row_spec, col_spec, col_spec],
                out_specs=row_spec),
            compiler_params=_cparams(("parallel",)),
        )(x2, scale, bias)
    else:
        r2 = residual.reshape(M, C)
        if Mp != M:
            r2 = jnp.pad(r2, ((0, Mp - M), (0, 0)))
        out = pl.pallas_call(
            _affine_residual_kernel,
            out_shape=jax.ShapeDtypeStruct((Mp, C), ACT_DTYPE),
            grid_spec=pltpu.PrefetchScalarGridSpec(
                num_scalar_prefetch=0, grid=(Mp // tm,),
                in_specs=[row_spec, col_spec, col_spec, row_spec],
                out_specs=row_spec),
            compiler_params=_cparams(("parallel",)),
        )(x2, scale, bias, r2)
    return out[:M].reshape(N, H, W, C)


def conv_bn(pc, pbn, x, *, stride=1, padding=0, dilation=1, relu=True,
            residual=None):
    out, stats = conv2d(x, pc["w"], pc["kh"], pc["kw"], b=pc.get("b"),
                        stride=stride, padding=padding, dilation=dilation,
                        want_stats=True)
    return batch_norm(out, pbn["gamma"], pbn["beta"], relu, stats,
                      residual=residual)


# ----------------------------------------------------------------------------- #
# Maxpool: VPU max-tree over lane-dense taps
# ----------------------------------------------------------------------------- #
def _max_tree_kernel(*refs):
    o_ref = refs[-1]
    m = refs[0][...]
    for r in refs[1:-1]:
        m = jnp.maximum(m, r[...])
    o_ref[...] = m


def maxpool2d(x, kernel=3, stride=2, padding=1):
    N, H, W, C = x.shape
    xp = jnp.pad(x, ((0, 0), (padding, padding), (padding, padding), (0, 0)),
                 constant_values=-jnp.inf)
    Hout = (H + 2 * padding - kernel) // stride + 1
    Wout = (W + 2 * padding - kernel) // stride + 1
    taps = []
    for i in range(kernel):
        for j in range(kernel):
            taps.append(xp[:, i:i + (Hout - 1) * stride + 1:stride,
                              j:j + (Wout - 1) * stride + 1:stride, :]
                        .reshape(N * Hout, Wout * C))
    M, L = N * Hout, Wout * C
    Mp, tm = _row_tiles(M, L, target_bytes=1536 << 10)
    if Mp != M:
        taps = [jnp.pad(t, ((0, Mp - M), (0, 0))) for t in taps]
    spec = pl.BlockSpec((tm, L), lambda i: (i, 0))
    out = pl.pallas_call(
        _max_tree_kernel,
        out_shape=jax.ShapeDtypeStruct((Mp, L), x.dtype),
        grid_spec=pltpu.PrefetchScalarGridSpec(
            num_scalar_prefetch=0, grid=(Mp // tm,),
            in_specs=[spec] * len(taps),
            out_specs=spec),
        compiler_params=_cparams(("parallel",)),
    )(*taps)
    return out[:M].reshape(N, Hout, Wout, C)


# ----------------------------------------------------------------------------- #
# Global average pool (NHWC) with a tiled accumulating reduction
# ----------------------------------------------------------------------------- #
def _gap_kernel(x_ref, o_ref, *, inv_hw):
    @pl.when(pl.program_id(1) == 0)
    def _():
        o_ref[...] = jnp.zeros_like(o_ref)
    o_ref[...] += jnp.sum(x_ref[...].astype(jnp.float32), axis=1,
                          keepdims=True) * inv_hw


def global_avg_pool(x):
    N, H, W, C = x.shape
    HW = H * W
    x3 = x.reshape(N, HW, C)
    thw = min(_round_up(HW, 8), 512)
    HWp = _round_up(HW, thw)
    if HWp != HW:
        x3 = jnp.pad(x3, ((0, 0), (0, HWp - HW), (0, 0)))
    out = pl.pallas_call(
        functools.partial(_gap_kernel, inv_hw=1.0 / HW),
        out_shape=jax.ShapeDtypeStruct((N, 1, C), jnp.float32),
        grid_spec=pltpu.PrefetchScalarGridSpec(
            num_scalar_prefetch=0, grid=(N, HWp // thw),
            in_specs=[pl.BlockSpec((1, thw, C), lambda n, t: (n, t, 0))],
            out_specs=pl.BlockSpec((1, 1, C), lambda n, t: (n, 0, 0))),
        compiler_params=_cparams(("parallel", "arbitrary")),
    )(x3)
    return out.reshape(N, 1, 1, C)


# ----------------------------------------------------------------------------- #
# Bilinear upsampling: two NHWC lane-dense matmuls, no HBM transposes
# ----------------------------------------------------------------------------- #
def _bilinear_matrix(in_size, out_size):
    """PyTorch F.interpolate(mode='bilinear', align_corners=False) weights."""
    m = np.zeros((out_size, in_size), np.float32)
    scale = in_size / out_size
    for i in range(out_size):
        src = max((i + 0.5) * scale - 0.5, 0.0)
        lo = min(int(np.floor(src)), in_size - 1)
        hi = min(lo + 1, in_size - 1)
        w_hi = src - lo
        m[i, lo] += 1.0 - w_hi
        m[i, hi] += w_hi
    return m


def bilinear_upsample_nhwc(x, out_h, out_w):
    N, h, w, C = x.shape
    Wh = _bilinear_matrix(h, out_h)                              # (out_h, h)
    Ww = _bilinear_matrix(w, out_w)                              # (out_w, w)
    A1 = np.kron(np.eye(N, dtype=np.float32), Wh)                # (N*out_h, N*h)
    G2 = np.kron(Ww.T, np.eye(C, dtype=np.float32))              # (w*C, out_w*C)
    t = pallas_matmul(jnp.asarray(A1), x.reshape(N * h, w * C))  # (N*out_h, w*C)
    t = pallas_matmul(t, jnp.asarray(G2))                        # (N*out_h, out_w*C)
    return t.reshape(N, out_h, out_w, C)


# ----------------------------------------------------------------------------- #
# Parameters (deterministic synthetic init; weights pre-folded to matmul form)
# ----------------------------------------------------------------------------- #
class ParamGen:
    def __init__(self, key):
        self.key = key

    def _next(self):
        self.key, sub = jax.random.split(self.key)
        return sub

    def conv(self, cout, cin, kh, kw, bias=False):
        w = 0.05 * jax.random.normal(self._next(), (cout, cin, kh, kw), jnp.float32)
        # fold (Cout, Cin, kh, kw) -> (kh*kw*Cin, Cout), pre-cast to bf16 (MXU)
        w_mat = w.transpose(2, 3, 1, 0).reshape(kh * kw * cin, cout).astype(jnp.bfloat16)
        p = {"w": w_mat, "kh": kh, "kw": kw}
        if bias:
            p["b"] = jnp.zeros((cout,), jnp.float32)
        return p

    def bn(self, c):
        return {"gamma": jnp.ones((c,), jnp.float32),
                "beta": jnp.zeros((c,), jnp.float32)}


def make_bottleneck(pg, inplanes, planes, stride, dilation, downsample):
    p = {"conv1": pg.conv(planes, inplanes, 1, 1), "bn1": pg.bn(planes),
         "conv2": pg.conv(planes, planes, 3, 3), "bn2": pg.bn(planes),
         "conv3": pg.conv(planes * 4, planes, 1, 1), "bn3": pg.bn(planes * 4),
         "stride": stride, "dilation": dilation}
    if downsample:
        p["ds_conv"] = pg.conv(planes * 4, inplanes, 1, 1)
        p["ds_bn"] = pg.bn(planes * 4)
    return p


def make_resnet50_params(pg):
    # replace_stride_with_dilation = [False, True, True]  (output stride 8)
    params = {"conv1": pg.conv(64, 3, 7, 7), "bn1": pg.bn(64)}
    inplanes, dilation = 64, 1
    cfg = [(64, 3, 1, False), (128, 4, 2, False), (256, 6, 2, True), (512, 3, 2, True)]
    layers = []
    for planes, blocks, stride, dilate in cfg:
        previous_dilation = dilation
        if dilate:
            dilation *= stride
            stride = 1
        blk_list = [make_bottleneck(pg, inplanes, planes, stride, previous_dilation,
                                    downsample=(stride != 1 or inplanes != planes * 4))]
        inplanes = planes * 4
        for _ in range(1, blocks):
            blk_list.append(make_bottleneck(pg, inplanes, planes, 1, dilation, False))
        layers.append(blk_list)
    params["layers"] = layers
    return params


def make_head_params(pg, in_ch, num_classes):
    rates = [12, 24, 36]
    aspp = {"b0_conv": pg.conv(256, in_ch, 1, 1), "b0_bn": pg.bn(256),
            "branches": [{"conv": pg.conv(256, in_ch, 3, 3), "bn": pg.bn(256), "rate": r}
                         for r in rates],
            "pool_conv": pg.conv(256, in_ch, 1, 1), "pool_bn": pg.bn(256),
            "proj_conv": pg.conv(256, 5 * 256, 1, 1), "proj_bn": pg.bn(256)}
    return {"aspp": aspp,
            "conv": pg.conv(256, 256, 3, 3), "bn": pg.bn(256),
            "cls": pg.conv(num_classes, 256, 1, 1, bias=True)}


# ----------------------------------------------------------------------------- #
# Forward pass (internal layout: NHWC, bf16 activations)
# ----------------------------------------------------------------------------- #
def bottleneck_forward(p, x):
    identity = x
    out = conv_bn(p["conv1"], p["bn1"], x, relu=True)
    out = conv_bn(p["conv2"], p["bn2"], out, stride=p["stride"],
                  padding=p["dilation"], dilation=p["dilation"], relu=True)
    if "ds_conv" in p:
        identity = conv_bn(p["ds_conv"], p["ds_bn"], x, stride=p["stride"],
                           relu=False)
    # BN3 + residual add + ReLU fused in one tiled pass
    return conv_bn(p["conv3"], p["bn3"], out, relu=True, residual=identity)


def resnet_forward(params, x):
    x = conv_bn(params["conv1"], params["bn1"], x, stride=2, padding=3, relu=True)
    x = maxpool2d(x, 3, 2, 1)
    for layer in params["layers"]:
        for blk in layer:
            x = bottleneck_forward(blk, x)
    return x


def head_forward(p, x):
    a = p["aspp"]
    N, H, W, C = x.shape
    feats = [conv_bn(a["b0_conv"], a["b0_bn"], x, relu=True)]
    for br in a["branches"]:
        feats.append(conv_bn(br["conv"], br["bn"], x, padding=br["rate"],
                             dilation=br["rate"], relu=True))
    t = global_avg_pool(x)
    t = conv_bn(a["pool_conv"], a["pool_bn"], t, relu=True)
    # bilinear upsample from 1x1 (align_corners=False) == exact broadcast
    feats.append(jnp.broadcast_to(t, (N, H, W, t.shape[-1])))
    t = jnp.concatenate(feats, axis=-1)
    t = conv_bn(a["proj_conv"], a["proj_bn"], t, relu=True)
    # TODO(synk): nn.Dropout(0.5) is stochastic in train mode; applied as identity here.
    t = conv_bn(p["conv"], p["bn"], t, padding=1, relu=True)
    t = apply_conv(p["cls"], t)        # 1x1 conv, bias fused in matmul epilogue
    return t


def segmenter_forward(params, input_dict):
    img = input_dict["img"]                               # (N, 3, H, W) NCHW
    H, W = img.shape[-2], img.shape[-1]
    x = jnp.transpose(img, (0, 2, 3, 1)).astype(ACT_DTYPE)   # NHWC internal
    feat = resnet_forward(params["backbone"], x)          # (N, H/8, W/8, 2048)
    out = head_forward(params["classifier"], feat)        # (N, H/8, W/8, n_cls)
    out = bilinear_upsample_nhwc(out, H, W)               # (N, H, W, n_cls)
    out = jnp.transpose(out, (0, 3, 1, 2))                # back to NCHW
    return {"seg": out}


def build_segmenter_params(key, n_classes):
    pg = ParamGen(key)
    return {"backbone": make_resnet50_params(pg),
            "classifier": make_head_params(pg, 2048, n_classes)}


# ----------------------------------------------------------------------------- #
if __name__ == "__main__":
    hyper_paras = {"n_classes": 5}
    key = jax.random.PRNGKey(0)
    pkey, xkey = jax.random.split(key)

    params = build_segmenter_params(pkey, hyper_paras["n_classes"])

    # small NCHW image batch (spatial 32 keeps the output-stride-8 backbone valid)
    img = jax.random.normal(xkey, (2, 3, 32, 32), jnp.float32)
    out = segmenter_forward(params, {"img": img})
    seg = jax.block_until_ready(out["seg"])

    assert seg.shape == (2, hyper_paras["n_classes"], 32, 32), seg.shape
    assert bool(jnp.all(jnp.isfinite(seg)))
    print("KERNEL_OK")
</pallas_src>

<mosaic_0001>
module attributes {stable_mosaic.version = 11 : i64} {
  func.func @_matmul_kernel(%arg0: i32, %arg1: i32, %arg2: i32, %arg3: memref<512x147xbf16, #tpu.memory_space<vmem>>, %arg4: memref<147x128xbf16, #tpu.memory_space<vmem>>, %arg5: memref<512x128xf32, #tpu.memory_space<vmem>>, %arg6: memref<1x1x128xf32, #tpu.memory_space<vmem>>, %arg7: memref<1x1x128xf32, #tpu.memory_space<vmem>>) attributes {dimension_semantics = [#tpu.dimension_semantics<parallel>, #tpu.dimension_semantics<parallel>, #tpu.dimension_semantics<arbitrary>], iteration_bounds = array<i64: 1, 1, 1>, scalar_prefetch = 0 : i64, scratch_operands = 0 : i64, tpu.core_type = #tpu.core_type<tc>, window_params = [{transform_indices = @transform_0, window_bounds = array<i64: 512, 147>}, {transform_indices = @transform_1, window_bounds = array<i64: 147, 128>}, {transform_indices = @transform_2, window_bounds = array<i64: 512, 128>}, {transform_indices = @transform_3, window_bounds = array<i64: 1, 1, 128>}, {transform_indices = @transform_4, window_bounds = array<i64: 1, 1, 128>}]} {
    %c0_i32 = arith.constant 0 : i32
    %0 = arith.cmpi eq, %arg2, %c0_i32 : i32
    %1 = arith.extui %0 : i1 to i32
    %c0_i32_0 = arith.constant 0 : i32
    %2 = arith.cmpi ne, %1, %c0_i32_0 : i32
    scf.if %2 {
      %cst_12 = arith.constant 0.000000e+00 : f32
      %15 = vector.broadcast %cst_12 : f32 to vector<512x128xf32>
      %c0_13 = arith.constant 0 : index
      %c0_14 = arith.constant 0 : index
      %16 = vector.load %arg5[%c0_13, %c0_14] : memref<512x128xf32, #tpu.memory_space<vmem>>, vector<512x128xf32>
      tpu.vector_store %arg5[%c0_13, %c0_14], %15 {strides = array<i32>} : memref<512x128xf32, #tpu.memory_space<vmem>>, vector<512x128xf32>,
    } else {
    }
    %c0 = arith.constant 0 : index
    %c0_1 = arith.constant 0 : index
    %3 = vector.load %arg5[%c0, %c0_1] : memref<512x128xf32, #tpu.memory_space<vmem>>, vector<512x128xf32>
    %c0_2 = arith.constant 0 : index
    %c0_3 = arith.constant 0 : index
    %4 = vector.load %arg3[%c0_2, %c0_3] : memref<512x147xbf16, #tpu.memory_space<vmem>>, vector<512x147xbf16>
    %c0_4 = arith.constant 0 : index
    %c0_5 = arith.constant 0 : index
    %5 = vector.load %arg4[%c0_4, %c0_5] : memref<147x128xbf16, #tpu.memory_space<vmem>>, vector<147x128xbf16>
    %cst = arith.constant dense<0.000000e+00> : vector<512x128xf32>
    %6 = tpu.matmul %4, %5, %cst {dimension_numbers = #tpu.dot_dimension_numbers<[1], [0], [0], [1], [0, 0, 1, 1], [], []>} : vector<512x147xbf16>, vector<147x128xbf16>, vector<512x128xf32> -> vector<512x128xf32>
    %7 = arith.addf %3, %6 : vector<512x128xf32>
    %c0_6 = arith.constant 0 : index
    %c0_7 = arith.constant 0 : index
    %8 = vector.load %arg5[%c0_6, %c0_7] : memref<512x128xf32, #tpu.memory_space<vmem>>, vector<512x128xf32>
    tpu.vector_store %arg5[%c0_6, %c0_7], %7 {strides = array<i32>} : memref<512x128xf32, #tpu.memory_space<vmem>>, vector<512x128xf32>,
    %c0_i32_8 = arith.constant 0 : i32
    %9 = arith.cmpi eq, %arg2, %c0_i32_8 : i32
    %10 = arith.extui %9 : i1 to i32
    %c0_i32_9 = arith.constant 0 : i32
    %11 = arith.cmpi ne, %10, %c0_i32_9 : i32
    scf.if %11 {
      %cst_12 = arith.constant 0.000000e+00 : f32
      %15 = vector.broadcast %cst_12 : f32 to vector<1x1x128xf32>
      %c0_13 = arith.constant 0 : index
      %c0_14 = arith.constant 0 : index
      %c0_15 = arith.constant 0 : index
      %16 = vector.load %arg6[%c0_13, %c0_14, %c0_15] : memref<1x1x128xf32, #tpu.memory_space<vmem>>, vector<1x1x128xf32>
      tpu.vector_store %arg6[%c0_13, %c0_14, %c0_15], %15 {strides = array<i32>} : memref<1x1x128xf32, #tpu.memory_space<vmem>>, vector<1x1x128xf32>,
      %cst_16 = arith.constant 0.000000e+00 : f32
      %17 = vector.broadcast %cst_16 : f32 to vector<1x1x128xf32>
      %c0_17 = arith.constant 0 : index
      %c0_18 = arith.constant 0 : index
      %c0_19 = arith.constant 0 : index
      %18 = vector.load %arg7[%c0_17, %c0_18, %c0_19] : memref<1x1x128xf32, #tpu.memory_space<vmem>>, vector<1x1x128xf32>
      tpu.vector_store %arg7[%c0_17, %c0_18, %c0_19], %17 {strides = array<i32>} : memref<1x1x128xf32, #tpu.memory_space<vmem>>, vector<1x1x128xf32>,
    } else {
    }
    %c0_i32_10 = arith.constant 0 : i32
    %12 = arith.cmpi eq, %arg2, %c0_i32_10 : i32
    %13 = arith.extui %12 : i1 to i32
    %c0_i32_11 = arith.constant 0 : i32
    %14 = arith.cmpi ne, %13, %c0_i32_11 : i32
    scf.if %14 {
      %c0_12 = arith.constant 0 : index
      %c0_13 = arith.constant 0 : index
      %15 = vector.load %arg5[%c0_12, %c0_13] : memref<512x128xf32, #tpu.memory_space<vmem>>, vector<512x128xf32>
      %cst_14 = arith.constant dense<0.000000e+00> : vector<128xf32>
      %16 = vector.multi_reduction <add>, %15, %cst_14 [0] : vector<512x128xf32> to vector<128xf32>
      %17 = vector.shape_cast %16 : vector<128xf32> to vector<1x1x128xf32>
      %c0_15 = arith.constant 0 : index
      %c0_16 = arith.constant 0 : index
      %c0_17 = arith.constant 0 : index
      %18 = vector.load %arg6[%c0_15, %c0_16, %c0_17] : memref<1x1x128xf32, #tpu.memory_space<vmem>>, vector<1x1x128xf32>
      tpu.vector_store %arg6[%c0_15, %c0_16, %c0_17], %17 {strides = array<i32>} : memref<1x1x128xf32, #tpu.memory_space<vmem>>, vector<1x1x128xf32>,
      %19 = arith.mulf %15, %15 : vector<512x128xf32>
      %cst_18 = arith.constant dense<0.000000e+00> : vector<128xf32>
      %20 = vector.multi_reduction <add>, %19, %cst_18 [0] : vector<512x128xf32> to vector<128xf32>
      %21 = vector.shape_cast %20 : vector<128xf32> to vector<1x1x128xf32>
      %c0_19 = arith.constant 0 : index
      %c0_20 = arith.constant 0 : index
      %c0_21 = arith.constant 0 : index
      %22 = vector.load %arg7[%c0_19, %c0_20, %c0_21] : memref<1x1x128xf32, #tpu.memory_space<vmem>>, vector<1x1x128xf32>
      tpu.vector_store %arg7[%c0_19, %c0_20, %c0_21], %21 {strides = array<i32>} : memref<1x1x128xf32, #tpu.memory_space<vmem>>, vector<1x1x128xf32>,
    } else {
    }
    return
  }
  func.func @transform_0(%arg0: i32, %arg1: i32, %arg2: i32) -> (i32, i32) {
    %c0_i32 = arith.constant 0 : i32
    return %arg0, %arg2 : i32, i32
  }
  func.func @transform_1(%arg0: i32, %arg1: i32, %arg2: i32) -> (i32, i32) {
    %c0_i32 = arith.constant 0 : i32
    return %arg2, %arg1 : i32, i32
  }
  func.func @transform_2(%arg0: i32, %arg1: i32, %arg2: i32) -> (i32, i32) {
    %c0_i32 = arith.constant 0 : i32
    return %arg0, %arg1 : i32, i32
  }
  func.func @transform_3(%arg0: i32, %arg1: i32, %arg2: i32) -> (i32, i32, i32) {
    %c0_i32 = arith.constant 0 : i32
    %c0_i32_0 = arith.constant 0 : i32
    return %arg0, %c0_i32, %arg1 : i32, i32, i32
  }
  func.func @transform_4(%arg0: i32, %arg1: i32, %arg2: i32) -> (i32, i32, i32) {
    %c0_i32 = arith.constant 0 : i32
    %c0_i32_0 = arith.constant 0 : i32
    return %arg0, %c0_i32, %arg1 : i32, i32, i32
  }
}

</mosaic_0001>

<llo_original>
// kernel: tpu_custom_call.1
$region0: #{tpu_custom_call.1}
  #allocation0 [shape = 'u32[]', space=smem, size = 0x4, offset = 0x4, fixed_abs, tag = 'smem constant byte address 0x4 - core index']
  #allocation1 [shape = 'u32[144,128]{1,0:T(1,128)}', space=vmem, size = 0x12000, scoped, tag = 'internal scratch']
  %s0 = inlined_call_operand.vmem [shape: bf16[512,147], index: 0, kind: input, shape index: {}]
  %s1 = inlined_call_operand.vmem [shape: bf16[147,128], index: 1, kind: input, shape index: {}]
  %s2 = inlined_call_operand.hbm [shape: f32[512,128], index: 2, kind: output, shape index: {0}]
  %s3 = inlined_call_operand.hbm [shape: f32[1,1,128], index: 3, kind: output, shape index: {1}]
  %s4 = inlined_call_operand.hbm [shape: f32[1,1,128], index: 4, kind: output, shape index: {2}]
  %5 = xla_tuple %s2, %s3, %s4
  %s6 = sld [smem:[#allocation0]]
  $region42: #{tpu_custom_call.1} parent=0
    _
  %s8 = ssub.s32 1, %s6
  %s9 = scalar_select 0, %s8, %s6
  $region1: #{tpu_custom_call.1} parent=0
    #allocation2 [shape = 'u8[262144]{0}', space=vmem, size = 0x40000, scoped, tag = 'output window, operand 0, single buffered']
    #allocation3 [shape = 's32[1]{0}', space=sflag, size = 0x4, scoped, tag = 'scoped memory for tpu_custom_call.1']
    #allocation4 [shape = 'u8[512]{0}', space=vmem, size = 0x400, scoped, tag = 'output window, operand 1, single buffered']
    #allocation5 [shape = 's32[1]{0}', space=sflag, size = 0x4, scoped, tag = 'scoped memory for tpu_custom_call.1']
    #allocation6 [shape = 'u8[512]{0}', space=vmem, size = 0x400, scoped, tag = 'output window, operand 2, single buffered']
    %10 = vsyncpa [#allocation3], 0
    %11 = vsyncpa [#allocation5], 0
    // Predicated region
    $region2: #{tpu_custom_call.1} parent=1 // pred_check
      _
    $region3: #{tpu_custom_call.1} parent=1 // pred_check_branch
      %13 = sbr.rel (0) target = $region5
    $region4: #{tpu_custom_call.1} parent=1 // pred_region
      _
    $region5: #{tpu_custom_call.1} parent=1 // pred_fallthru
      _
    // Predicated region
    $region6: #{tpu_custom_call.1} parent=1 // pred_check
      _
    $region7: #{tpu_custom_call.1} parent=1 // pred_check_branch
      %15 = sbr.rel (0) target = $region9
    $region8: #{tpu_custom_call.1} parent=1 // pred_region
      _
    $region9: #{tpu_custom_call.1} parent=1 // pred_fallthru
      _
    %p17 = scmp.eq.s32.totalorder 0, 0
    // Predicated region
    $region10: #{tpu_custom_call.1} parent=1 // pred_check
      %p18 = pneg %p17
    $region11: #{tpu_custom_call.1} parent=1 // pred_check_branch
      %20 = sbr.rel (%p18) target = $region13
    $region12: #{tpu_custom_call.1} parent=1 // pred_region
      %21 = vst [vmem:[#allocation2] sm:$0xff] 0.0
      %22 = vst [vmem:[#allocation2 + $0x8] sm:$0xff] 0.0
      %23 = vst [vmem:[#allocation2 + $0x10] sm:$0xff] 0.0
      %24 = vst [vmem:[#allocation2 + $0x18] sm:$0xff] 0.0
      %25 = vst [vmem:[#allocation2 + $0x20] sm:$0xff] 0.0
      %26 = vst [vmem:[#allocation2 + $0x28] sm:$0xff] 0.0
      %27 = vst [vmem:[#allocation2 + $0x30] sm:$0xff] 0.0
      %28 = vst [vmem:[#allocation2 + $0x38] sm:$0xff] 0.0
      %29 = vst [vmem:[#allocation2 + $0x40] sm:$0xff] 0.0
      %30 = vst [vmem:[#allocation2 + $0x48] sm:$0xff] 0.0
      %31 = vst [vmem:[#allocation2 + $0x50] sm:$0xff] 0.0
      %32 = vst [vmem:[#allocation2 + $0x58] sm:$0xff] 0.0
      %33 = vst [vmem:[#allocation2 + $0x60] sm:$0xff] 0.0
      %34 = vst [vmem:[#allocation2 + $0x68] sm:$0xff] 0.0
      %35 = vst [vmem:[#allocation2 + $0x70] sm:$0xff] 0.0
      %36 = vst [vmem:[#allocation2 + $0x78] sm:$0xff] 0.0
      %37 = vst [vmem:[#allocation2 + $0x80] sm:$0xff] 0.0
      %38 = vst [vmem:[#allocation2 + $0x88] sm:$0xff] 0.0
      %39 = vst [vmem:[#allocation2 + $0x90] sm:$0xff] 0.0
      %40 = vst [vmem:[#allocation2 + $0x98] sm:$0xff] 0.0
      %41 = vst [vmem:[#allocation2 + $0xa0] sm:$0xff] 0.0
      %42 = vst [vmem:[#allocation2 + $0xa8] sm:$0xff] 0.0
      %43 = vst [vmem:[#allocation2 + $0xb0] sm:$0xff] 0.0
      %44 = vst [vmem:[#allocation2 + $0xb8] sm:$0xff] 0.0
      %45 = vst [vmem:[#allocation2 + $0xc0] sm:$0xff] 0.0
      %46 = vst [vmem:[#allocation2 + $0xc8] sm:$0xff] 0.0
      %47 = vst [vmem:[#allocation2 + $0xd0] sm:$0xff] 0.0
      %48 = vst [vmem:[#allocation2 + $0xd8] sm:$0xff] 0.0
      %49 = vst [vmem:[#allocation2 + $0xe0] sm:$0xff] 0.0
      %50 = vst [vmem:[#allocation2 + $0xe8] sm:$0xff] 0.0
      %51 = vst [vmem:[#allocation2 + $0xf0] sm:$0xff] 0.0
      %52 = vst [vmem:[#allocation2 + $0xf8] sm:$0xff] 0.0
      %53 = vst [vmem:[#allocation2 + $0x100] sm:$0xff] 0.0
      %54 = vst [vmem:[#allocation2 + $0x108] sm:$0xff] 0.0
      %55 = vst [vmem:[#allocation2 + $0x110] sm:$0xff] 0.0
      %56 = vst [vmem:[#allocation2 + $0x118] sm:$0xff] 0.0
      %57 = vst [vmem:[#allocation2 + $0x120] sm:$0xff] 0.0
      %58 = vst [vmem:[#allocation2 + $0x128] sm:$0xff] 0.0
      %59 = vst [vmem:[#allocation2 + $0x130] sm:$0xff] 0.0
      %60 = vst [vmem:[#allocation2 + $0x138] sm:$0xff] 0.0
      %61 = vst [vmem:[#allocation2 + $0x140] sm:$0xff] 0.0
      %62 = vst [vmem:[#allocation2 + $0x148] sm:$0xff] 0.0
      %63 = vst [vmem:[#allocation2 + $0x150] sm:$0xff] 0.0
      %64 = vst [vmem:[#allocation2 + $0x158] sm:$0xff] 0.0
      %65 = vst [vmem:[#allocation2 + $0x160] sm:$0xff] 0.0
      %66 = vst [vmem:[#allocation2 + $0x168] sm:$0xff] 0.0
      %67 = vst [vmem:[#allocation2 + $0x170] sm:$0xff] 0.0
      %68 = vst [vmem:[#allocation2 + $0x178] sm:$0xff] 0.0
      %69 = vst [vmem:[#allocation2 + $0x180] sm:$0xff] 0.0
      %70 = vst [vmem:[#allocation2 + $0x188] sm:$0xff] 0.0
      %71 = vst [vmem:[#allocation2 + $0x190] sm:$0xff] 0.0
      %72 = vst [vmem:[#allocation2 + $0x198] sm:$0xff] 0.0
      %73 = vst [vmem:[#allocation2 + $0x1a0] sm:$0xff] 0.0
      %74 = vst [vmem:[#allocation2 + $0x1a8] sm:$0xff] 0.0
      %75 = vst [vmem:[#allocation2 + $0x1b0] sm:$0xff] 0.0
      %76 = vst [vmem:[#allocation2 + $0x1b8] sm:$0xff] 0.0
      %77 = vst [vmem:[#allocation2 + $0x1c0] sm:$0xff] 0.0
      %78 = vst [vmem:[#allocation2 + $0x1c8] sm:$0xff] 0.0
      %79 = vst [vmem:[#allocation2 + $0x1d0] sm:$0xff] 0.0
      %80 = vst [vmem:[#allocation2 + $0x1d8] sm:$0xff] 0.0
      %81 = vst [vmem:[#allocation2 + $0x1e0] sm:$0xff] 0.0
      %82 = vst [vmem:[#allocation2 + $0x1e8] sm:$0xff] 0.0
      %83 = vst [vmem:[#allocation2 + $0x1f0] sm:$0xff] 0.0
      %84 = vst [vmem:[#allocation2 + $0x1f8] sm:$0xff] 0.0
    $region13: #{tpu_custom_call.1} parent=1 // pred_fallthru
      _
    %v85 = vld [vmem:[#allocation2] sm:$0xff]
    %v86 = vld [vmem:[#allocation2 + $0x8] sm:$0xff]
    %v87 = vld [vmem:[#allocation2 + $0x10] sm:$0xff]
    %v88 = vld [vmem:[#allocation2 + $0x18] sm:$0xff]
    %v89 = vld [vmem:[#allocation2 + $0x20] sm:$0xff]
    %v90 = vld [vmem:[#allocation2 + $0x28] sm:$0xff]
    %v91 = vld [vmem:[#allocation2 + $0x30] sm:$0xff]
    %v92 = vld [vmem:[#allocation2 + $0x38] sm:$0xff]
    %v93 = vld [vmem:[#allocation2 + $0x40] sm:$0xff]
    %v94 = vld [vmem:[#allocation2 + $0x48] sm:$0xff]
    %v95 = vld [vmem:[#allocation2 + $0x50] sm:$0xff]
    %v96 = vld [vmem:[#allocation2 + $0x58] sm:$0xff]
    %v97 = vld [vmem:[#allocation2 + $0x60] sm:$0xff]
    %v98 = vld [vmem:[#allocation2 + $0x68] sm:$0xff]
    %v99 = vld [vmem:[#allocation2 + $0x70] sm:$0xff]
    %v100 = vld [vmem:[#allocation2 + $0x78] sm:$0xff]
    %v101 = vld [vmem:[#allocation2 + $0x80] sm:$0xff]
    %v102 = vld [vmem:[#allocation2 + $0x88] sm:$0xff]
    %v103 = vld [vmem:[#allocation2 + $0x90] sm:$0xff]
    %v104 = vld [vmem:[#allocation2 + $0x98] sm:$0xff]
    %v105 = vld [vmem:[#allocation2 + $0xa0] sm:$0xff]
    %v106 = vld [vmem:[#allocation2 + $0xa8] sm:$0xff]
    %v107 = vld [vmem:[#allocation2 + $0xb0] sm:$0xff]
    %v108 = vld [vmem:[#allocation2 + $0xb8] sm:$0xff]
    %v109 = vld [vmem:[#allocation2 + $0xc0] sm:$0xff]
    %v110 = vld [vmem:[#allocation2 + $0xc8] sm:$0xff]
    %v111 = vld [vmem:[#allocation2 + $0xd0] sm:$0xff]
    %v112 = vld [vmem:[#allocation2 + $0xd8] sm:$0xff]
    %v113 = vld [vmem:[#allocation2 + $0xe0] sm:$0xff]
    %v114 = vld [vmem:[#allocation2 + $0xe8] sm:$0xff]
    %v115 = vld [vmem:[#allocation2 + $0xf0] sm:$0xff]
    %v116 = vld [vmem:[#allocation2 + $0xf8] sm:$0xff]
    %v117 = vld [vmem:[#allocation2 + $0x100] sm:$0xff]
    %v118 = vld [vmem:[#allocation2 + $0x108] sm:$0xff]
    %v119 = vld [vmem:[#allocation2 + $0x110] sm:$0xff]
    %v120 = vld [vmem:[#allocation2 + $0x118] sm:$0xff]
    %v121 = vld [vmem:[#allocation2 + $0x120] sm:$0xff]
    %v122 = vld [vmem:[#allocation2 + $0x128] sm:$0xff]
    %v123 = vld [vmem:[#allocation2 + $0x130] sm:$0xff]
    %v124 = vld [vmem:[#allocation2 + $0x138] sm:$0xff]
    %v125 = vld [vmem:[#allocation2 + $0x140] sm:$0xff]
    %v126 = vld [vmem:[#allocation2 + $0x148] sm:$0xff]
    %v127 = vld [vmem:[#allocation2 + $0x150] sm:$0xff]
    %v128 = vld [vmem:[#allocation2 + $0x158] sm:$0xff]
    %v129 = vld [vmem:[#allocation2 + $0x160] sm:$0xff]
    %v130 = vld [vmem:[#allocation2 + $0x168] sm:$0xff]
    %v131 = vld [vmem:[#allocation2 + $0x170] sm:$0xff]
    %v132 = vld [vmem:[#allocation2 + $0x178] sm:$0xff]
    %v133 = vld [vmem:[#allocation2 + $0x180] sm:$0xff]
    %v134 = vld [vmem:[#allocation2 + $0x188] sm:$0xff]
    %v135 = vld [vmem:[#allocation2 + $0x190] sm:$0xff]
    %v136 = vld [vmem:[#allocation2 + $0x198] sm:$0xff]
    %v137 = vld [vmem:[#allocation2 + $0x1a0] sm:$0xff]
    %v138 = vld [vmem:[#allocation2 + $0x1a8] sm:$0xff]
    %v139 = vld [vmem:[#allocation2 + $0x1b0] sm:$0xff]
    %v140 = vld [vmem:[#allocation2 + $0x1b8] sm:$0xff]
    %v141 = vld [vmem:[#allocation2 + $0x1c0] sm:$0xff]
    %v142 = vld [vmem:[#allocation2 + $0x1c8] sm:$0xff]
    %v143 = vld [vmem:[#allocation2 + $0x1d0] sm:$0xff]
    %v144 = vld [vmem:[#allocation2 + $0x1d8] sm:$0xff]
    %v145 = vld [vmem:[#allocation2 + $0x1e0] sm:$0xff]
    %v146 = vld [vmem:[#allocation2 + $0x1e8] sm:$0xff]
    %v147 = vld [vmem:[#allocation2 + $0x1f0] sm:$0xff]
    %v148 = vld [vmem:[#allocation2 + $0x1f8] sm:$0xff]
    %v149 = vld [vmem:[%s0] sm:$0xff]
    %v150 = vld [vmem:[%s0 + $0x8] sm:$0xff]
    %v151 = vld [vmem:[%s0 + $0x10] sm:$0xff]
    %v152 = vld [vmem:[%s0 + $0x18] sm:$0xff]
    %v153 = vld [vmem:[%s0 + $0x20] sm:$0xff]
    %v154 = vld [vmem:[%s0 + $0x28] sm:$0xff]
    %v155 = vld [vmem:[%s0 + $0x30] sm:$0xff]
    %v156 = vld [vmem:[%s0 + $0x38] sm:$0xff]
    %v157 = vld [vmem:[%s0 + $0x40] sm:$0xff]
    %v158 = vld [vmem:[%s0 + $0x48] sm:$0xff]
    %v159 = vld [vmem:[%s0 + $0x50] sm:$0xff]
    %v160 = vld [vmem:[%s0 + $0x58] sm:$0xff]
    %v161 = vld [vmem:[%s0 + $0x60] sm:$0xff]
    %v162 = vld [vmem:[%s0 + $0x68] sm:$0xff]
    %v163 = vld [vmem:[%s0 + $0x70] sm:$0xff]
    %v164 = vld [vmem:[%s0 + $0x78] sm:$0xff]
    %v165 = vld [vmem:[%s0 + $0x80] sm:$0xff]
    %v166 = vld [vmem:[%s0 + $0x88] sm:$0xff]
    %v167 = vld [vmem:[%s0 + $0x90] sm:$0xff]
    %v168 = vld [vmem:[%s0 + $0x98] sm:$0xff]
    %v169 = vld [vmem:[%s0 + $0xa0] sm:$0xff]
    %v170 = vld [vmem:[%s0 + $0xa8] sm:$0xff]
    %v171 = vld [vmem:[%s0 + $0xb0] sm:$0xff]
    %v172 = vld [vmem:[%s0 + $0xb8] sm:$0xff]
    %v173 = vld [vmem:[%s0 + $0xc0] sm:$0xff]
    %v174 = vld [vmem:[%s0 + $0xc8] sm:$0xff]
    %v175 = vld [vmem:[%s0 + $0xd0] sm:$0xff]
    %v176 = vld [vmem:[%s0 + $0xd8] sm:$0xff]
    %v177 = vld [vmem:[%s0 + $0xe0] sm:$0xff]
    %v178 = vld [vmem:[%s0 + $0xe8] sm:$0xff]
    %v179 = vld [vmem:[%s0 + $0xf0] sm:$0xff]
    %v180 = vld [vmem:[%s0 + $0xf8] sm:$0xff]
    %v181 = vld [vmem:[%s0 + $0x100] sm:$0xff]
    %v182 = vld [vmem:[%s0 + $0x108] sm:$0xff]
    %v183 = vld [vmem:[%s0 + $0x110] sm:$0xff]
    %v184 = vld [vmem:[%s0 + $0x118] sm:$0xff]
    %v185 = vld [vmem:[%s0 + $0x120] sm:$0xff]
    %v186 = vld [vmem:[%s0 + $0x128] sm:$0xff]
    %v187 = vld [vmem:[%s0 + $0x130] sm:$0xff]
    %v188 = vld [vmem:[%s0 + $0x138] sm:$0xff]
    %v189 = vld [vmem:[%s0 + $0x140] sm:$0xff]
    %v190 = vld [vmem:[%s0 + $0x148] sm:$0xff]
    %v191 = vld [vmem:[%s0 + $0x150] sm:$0xff]
    %v192 = vld [vmem:[%s0 + $0x158] sm:$0xff]
    %v193 = vld [vmem:[%s0 + $0x160] sm:$0xff]
    %v194 = vld [vmem:[%s0 + $0x168] sm:$0xff]
    %v195 = vld [vmem:[%s0 + $0x170] sm:$0xff]
    %v196 = vld [vmem:[%s0 + $0x178] sm:$0xff]
    %v197 = vld [vmem:[%s0 + $0x180] sm:$0xff]
    %v198 = vld [vmem:[%s0 + $0x188] sm:$0xff]
    %v199 = vld [vmem:[%s0 + $0x190] sm:$0xff]
    %v200 = vld [vmem:[%s0 + $0x198] sm:$0xff]
    %v201 = vld [vmem:[%s0 + $0x1a0] sm:$0xff]
    %v202 = vld [vmem:[%s0 + $0x1a8] sm:$0xff]
    %v203 = vld [vmem:[%s0 + $0x1b0] sm:$0xff]
    %v204 = vld [vmem:[%s0 + $0x1b8] sm:$0xff]
    %v205 = vld [vmem:[%s0 + $0x1c0] sm:$0xff]
    %v206 = vld [vmem:[%s0 + $0x1c8] sm:$0xff]
    %v207 = vld [vmem:[%s0 + $0x1d0] sm:$0xff]
    %v208 = vld [vmem:[%s0 + $0x1d8] sm:$0xff]
    %v209 = vld [vmem:[%s0 + $0x1e0] sm:$0xff]
    %v210 = vld [vmem:[%s0 + $0x1e8] sm:$0xff]
    %v211 = vld [vmem:[%s0 + $0x1f0] sm:$0xff]
    %v212 = vld [vmem:[%s0 + $0x1f8] sm:$0xff]
    %v213 = vld [vmem:[%s1] sm:$0xf]
    %v214 = vld [vmem:[%s1 + $0x4] sm:$0xf]
    %v215 = vld [vmem:[%s1 + $0x8] sm:$0xf]
    %v216 = vld [vmem:[%s1 + $0xc] sm:$0xf]
    %v217 = vld [vmem:[%s1 + $0x10] sm:$0xf]
    %v218 = vld [vmem:[%s1 + $0x14] sm:$0xf]
    %v219 = vld [vmem:[%s1 + $0x18] sm:$0xf]
    %v220 = vld [vmem:[%s1 + $0x1c] sm:$0xf]
    %v221 = vld [vmem:[%s1 + $0x20] sm:$0xf]
    %v222 = vld [vmem:[%s1 + $0x24] sm:$0xf]
    %v223 = vld [vmem:[%s1 + $0x28] sm:$0xf]
    %v224 = vld [vmem:[%s1 + $0x2c] sm:$0xf]
    %v225 = vld [vmem:[%s1 + $0x30] sm:$0xf]
    %v226 = vld [vmem:[%s1 + $0x34] sm:$0xf]
    %v227 = vld [vmem:[%s1 + $0x38] sm:$0xf]
    %v228 = vld [vmem:[%s1 + $0x3c] sm:$0xf]
    %v229 = vld [vmem:[%s1 + $0x40] sm:$0xf]
    %v230 = vld [vmem:[%s1 + $0x44] sm:$0xf]
    %v231 = vld [vmem:[%s1 + $0x48] sm:$0x3]
    %v296 = vunpack.c.l.b16 %v149
    %v297 = vunpack.c.h.b16 %v149
    %v298 = vunpack.c.l.b16 %v150
    %v299 = vunpack.c.h.b16 %v150
    %v300 = vunpack.c.l.b16 %v151
    %v301 = vunpack.c.h.b16 %v151
    %v302 = vunpack.c.l.b16 %v152
    %v303 = vunpack.c.h.b16 %v152
    %v304 = vunpack.c.l.b16 %v153
    %v305 = vunpack.c.h.b16 %v153
    %v306 = vunpack.c.l.b16 %v154
    %v307 = vunpack.c.h.b16 %v154
    %v308 = vunpack.c.l.b16 %v155
    %v309 = vunpack.c.h.b16 %v155
    %v310 = vunpack.c.l.b16 %v156
    %v311 = vunpack.c.h.b16 %v156
    %v312 = vunpack.c.l.b16 %v157
    %v313 = vunpack.c.h.b16 %v157
    %v314 = vunpack.c.l.b16 %v158
    %v315 = vunpack.c.h.b16 %v158
    %v316 = vunpack.c.l.b16 %v159
    %v317 = vunpack.c.h.b16 %v159
    %v318 = vunpack.c.l.b16 %v160
    %v319 = vunpack.c.h.b16 %v160
    %v320 = vunpack.c.l.b16 %v161
    %v321 = vunpack.c.h.b16 %v161
    %v322 = vunpack.c.l.b16 %v162
    %v323 = vunpack.c.h.b16 %v162
    %v324 = vunpack.c.l.b16 %v163
    %v325 = vunpack.c.h.b16 %v163
    %v326 = vunpack.c.l.b16 %v164
    %v327 = vunpack.c.h.b16 %v164
    %v328 = vunpack.c.l.b16 %v165
    %v329 = vunpack.c.h.b16 %v165
    %v330 = vunpack.c.l.b16 %v166
    %v331 = vunpack.c.h.b16 %v166
    %v332 = vunpack.c.l.b16 %v167
    %v333 = vunpack.c.h.b16 %v167
    %v334 = vunpack.c.l.b16 %v168
    %v335 = vunpack.c.h.b16 %v168
    %v336 = vunpack.c.l.b16 %v169
    %v337 = vunpack.c.h.b16 %v169
    %v338 = vunpack.c.l.b16 %v170
    %v339 = vunpack.c.h.b16 %v170
    %v340 = vunpack.c.l.b16 %v171
    %v341 = vunpack.c.h.b16 %v171
    %v342 = vunpack.c.l.b16 %v172
    %v343 = vunpack.c.h.b16 %v172
    %v344 = vunpack.c.l.b16 %v173
    %v345 = vunpack.c.h.b16 %v173
    %v346 = vunpack.c.l.b16 %v174
    %v347 = vunpack.c.h.b16 %v174
    %v348 = vunpack.c.l.b16 %v175
    %v349 = vunpack.c.h.b16 %v175
    %v350 = vunpack.c.l.b16 %v176
    %v351 = vunpack.c.h.b16 %v176
    %v352 = vunpack.c.l.b16 %v177
    %v353 = vunpack.c.h.b16 %v177
    %v354 = vunpack.c.l.b16 %v178
    %v355 = vunpack.c.h.b16 %v178
    %v356 = vunpack.c.l.b16 %v179
    %v357 = vunpack.c.h.b16 %v179
    %v358 = vunpack.c.l.b16 %v180
    %v359 = vunpack.c.h.b16 %v180
    %v360 = vunpack.c.l.b16 %v181
    %v361 = vunpack.c.h.b16 %v181
    %v362 = vunpack.c.l.b16 %v182
    %v363 = vunpack.c.h.b16 %v182
    %v364 = vunpack.c.l.b16 %v183
    %v365 = vunpack.c.h.b16 %v183
    %v366 = vunpack.c.l.b16 %v184
    %v367 = vunpack.c.h.b16 %v184
    %v368 = vunpack.c.l.b16 %v185
    %v369 = vunpack.c.h.b16 %v185
    %v370 = vunpack.c.l.b16 %v186
    %v371 = vunpack.c.h.b16 %v186
    %v372 = vunpack.c.l.b16 %v187
    %v373 = vunpack.c.h.b16 %v187
    %v374 = vunpack.c.l.b16 %v188
    %v375 = vunpack.c.h.b16 %v188
    %v376 = vunpack.c.l.b16 %v189
    %v377 = vunpack.c.h.b16 %v189
    %v378 = vunpack.c.l.b16 %v190
    %v379 = vunpack.c.h.b16 %v190
    %v380 = vunpack.c.l.b16 %v191
    %v381 = vunpack.c.h.b16 %v191
    %v382 = vunpack.c.l.b16 %v192
    %v383 = vunpack.c.h.b16 %v192
    %v384 = vunpack.c.l.b16 %v193
    %v385 = vunpack.c.h.b16 %v193
    %v386 = vunpack.c.l.b16 %v194
    %v387 = vunpack.c.h.b16 %v194
    %v388 = vunpack.c.l.b16 %v195
    %v389 = vunpack.c.h.b16 %v195
    %v390 = vunpack.c.l.b16 %v196
    %v391 = vunpack.c.h.b16 %v196
    %v392 = vunpack.c.l.b16 %v197
    %v393 = vunpack.c.h.b16 %v197
    %v394 = vunpack.c.l.b16 %v198
    %v395 = vunpack.c.h.b16 %v198
    %v396 = vunpack.c.l.b16 %v199
    %v397 = vunpack.c.h.b16 %v199
    %v398 = vunpack.c.l.b16 %v200
    %v399 = vunpack.c.h.b16 %v200
    %v400 = vunpack.c.l.b16 %v201
    %v401 = vunpack.c.h.b16 %v201
    %v402 = vunpack.c.l.b16 %v202
    %v403 = vunpack.c.h.b16 %v202
    %v404 = vunpack.c.l.b16 %v203
    %v405 = vunpack.c.h.b16 %v203
    %v406 = vunpack.c.l.b16 %v204
    %v407 = vunpack.c.h.b16 %v204
    %v408 = vunpack.c.l.b16 %v205
    %v409 = vunpack.c.h.b16 %v205
    %v410 = vunpack.c.l.b16 %v206
    %v411 = vunpack.c.h.b16 %v206
    %v412 = vunpack.c.l.b16 %v207
    %v413 = vunpack.c.h.b16 %v207
    %v414 = vunpack.c.l.b16 %v208
    %v415 = vunpack.c.h.b16 %v208
    %v416 = vunpack.c.l.b16 %v209
    %v417 = vunpack.c.h.b16 %v209
    %v418 = vunpack.c.l.b16 %v210
    %v419 = vunpack.c.h.b16 %v210
    %v420 = vunpack.c.l.b16 %v211
    %v421 = vunpack.c.h.b16 %v211
    %v422 = vunpack.c.l.b16 %v212
    %v423 = vunpack.c.h.b16 %v212
    %v424 = vpack.c.b16 %v298, %v296
    %v425 = vpack.c.b16 %v299, %v297
    %v426 = vpack.c.b16 %v302, %v300
    %v427 = vpack.c.b16 %v303, %v301
    %v428 = vpack.c.b16 %v306, %v304
    %v429 = vpack.c.b16 %v307, %v305
    %v430 = vpack.c.b16 %v310, %v308
    %v431 = vpack.c.b16 %v311, %v309
    %v432 = vpack.c.b16 %v314, %v312
    %v433 = vpack.c.b16 %v315, %v313
    %v434 = vpack.c.b16 %v318, %v316
    %v435 = vpack.c.b16 %v319, %v317
    %v436 = vpack.c.b16 %v322, %v320
    %v437 = vpack.c.b16 %v323, %v321
    %v438 = vpack.c.b16 %v326, %v324
    %v439 = vpack.c.b16 %v327, %v325
    %v440 = vpack.c.b16 %v330, %v328
    %v441 = vpack.c.b16 %v331, %v329
    %v442 = vpack.c.b16 %v334, %v332
    %v443 = vpack.c.b16 %v335, %v333
    %v444 = vpack.c.b16 %v338, %v336
    %v445 = vpack.c.b16 %v339, %v337
    %v446 = vpack.c.b16 %v342, %v340
    %v447 = vpack.c.b16 %v343, %v341
    %v448 = vpack.c.b16 %v346, %v344
    %v449 = vpack.c.b16 %v347, %v345
    %v450 = vpack.c.b16 %v350, %v348
    %v451 = vpack.c.b16 %v351, %v349
    %v452 = vpack.c.b16 %v354, %v352
    %v453 = vpack.c.b16 %v355, %v353
    %v454 = vpack.c.b16 %v358, %v356
    %v455 = vpack.c.b16 %v359, %v357
    %v456 = vpack.c.b16 %v362, %v360
    %v457 = vpack.c.b16 %v363, %v361
    %v458 = vpack.c.b16 %v366, %v364
    %v459 = vpack.c.b16 %v367, %v365
    %v460 = vpack.c.b16 %v370, %v368
    %v461 = vpack.c.b16 %v371, %v369
    %v462 = vpack.c.b16 %v374, %v372
    %v463 = vpack.c.b16 %v375, %v373
    %v464 = vpack.c.b16 %v378, %v376
    %v465 = vpack.c.b16 %v379, %v377
    %v466 = vpack.c.b16 %v382, %v380
    %v467 = vpack.c.b16 %v383, %v381
    %v468 = vpack.c.b16 %v386, %v384
    %v469 = vpack.c.b16 %v387, %v385
    %v470 = vpack.c.b16 %v390, %v388
    %v471 = vpack.c.b16 %v391, %v389
    %v472 = vpack.c.b16 %v394, %v392
    %v473 = vpack.c.b16 %v395, %v393
    %v474 = vpack.c.b16 %v398, %v396
    %v475 = vpack.c.b16 %v399, %v397
    %v476 = vpack.c.b16 %v402, %v400
    %v477 = vpack.c.b16 %v403, %v401
    %v478 = vpack.c.b16 %v406, %v404
    %v479 = vpack.c.b16 %v407, %v405
    %v480 = vpack.c.b16 %v410, %v408
    %v481 = vpack.c.b16 %v411, %v409
    %v482 = vpack.c.b16 %v414, %v412
    %v483 = vpack.c.b16 %v415, %v413
    %v484 = vpack.c.b16 %v418, %v416
    %v485 = vpack.c.b16 %v419, %v417
    %v486 = vpack.c.b16 %v422, %v420
    %v487 = vpack.c.b16 %v423, %v421
    %v539 = vunpack.c.l.b16 %v213
    %v540 = vunpack.c.l.b16 %v214
    %v541 = vunpack.c.l.b16 %v215
    %v542 = vunpack.c.l.b16 %v216
    %v543 = vunpack.c.l.b16 %v217
    %v544 = vunpack.c.l.b16 %v218
    %v545 = vunpack.c.l.b16 %v219
    %v546 = vunpack.c.l.b16 %v220
    %v547 = vunpack.c.l.b16 %v221
    %v548 = vunpack.c.l.b16 %v222
    %v549 = vunpack.c.l.b16 %v223
    %v550 = vunpack.c.l.b16 %v224
    %v551 = vunpack.c.l.b16 %v225
    %v552 = vunpack.c.l.b16 %v226
    %v553 = vunpack.c.l.b16 %v227
    %v554 = vunpack.c.l.b16 %v228
    %v555 = vunpack.c.l.b16 %v229
    %v556 = vunpack.c.l.b16 %v230
    %v557 = vunpack.c.l.b16 %v231
    %v558 = vpack.c.b16 %v540, %v539
    %v559 = vpack.c.b16 %v542, %v541
    %v560 = vpack.c.b16 %v544, %v543
    %v561 = vpack.c.b16 %v546, %v545
    %v562 = vpack.c.b16 %v548, %v547
    %v563 = vpack.c.b16 %v550, %v549
    %v564 = vpack.c.b16 %v552, %v551
    %v565 = vpack.c.b16 %v554, %v553
    %v566 = vpack.c.b16 %v556, %v555
    %v567 = vpack.c.b16 %v557, %v557
    %vm577 = vcmask 154624
    %v579 = vsel %vm577, %v425, 0
    %v582 = vsel %vm577, %v427, 0
    %v585 = vsel %vm577, %v429, 0
    %v588 = vsel %vm577, %v431, 0
    %v591 = vsel %vm577, %v433, 0
    %v594 = vsel %vm577, %v435, 0
    %v597 = vsel %vm577, %v437, 0
    %v600 = vsel %vm577, %v439, 0
    %v603 = vsel %vm577, %v441, 0
    %v606 = vsel %vm577, %v443, 0
    %v609 = vsel %vm577, %v445, 0
    %v612 = vsel %vm577, %v447, 0
    %v615 = vsel %vm577, %v449, 0
    %v618 = vsel %vm577, %v451, 0
    %v621 = vsel %vm577, %v453, 0
    %v624 = vsel %vm577, %v455, 0
    %v627 = vsel %vm577, %v457, 0
    %v630 = vsel %vm577, %v459, 0
    %v633 = vsel %vm577, %v461, 0
    %v636 = vsel %vm577, %v463, 0
    %v639 = vsel %vm577, %v465, 0
    %v642 = vsel %vm577, %v467, 0
    %v645 = vsel %vm577, %v469, 0
    %v648 = vsel %vm577, %v471, 0
    %v651 = vsel %vm577, %v473, 0
    %v654 = vsel %vm577, %v475, 0
    %v657 = vsel %vm577, %v477, 0
    %v660 = vsel %vm577, %v479, 0
    %v663 = vsel %vm577, %v481, 0
    %v666 = vsel %vm577, %v483, 0
    %v669 = vsel %vm577, %v485, 0
    %v672 = vsel %vm577, %v487, 0
    %vm674 = vcmask 1040384
    %vm675 = vcmask 1041408
    %v676 = vsel %vm674, 4294967295, 65535
    %v677 = vsel %vm675, %v676, 0
    %v679 = vand.u32 %v567, %v677
    %681 = vmatprep.subr.bf16.mxu0 0
    %682 = vmatpush1.bf16.msra.mxu0 %v558
    %683 = vmatprep.subr.bf16.mxu0 0
    %684 = vmatpush1.bf16.msra.mxu0 %v559
    %685 = vmatprep.subr.bf16.mxu0 0
    %686 = vmatpush1.bf16.msra.mxu0 %v560
    %687 = vmatprep.subr.bf16.mxu0 0
    %688 = vmatpush1.bf16.msra.mxu0 %v561
    %689 = vmatprep.subr.bf16.mxu0 0
    %690 = vmatpush1.bf16.msra.mxu0 %v562
    %691 = vmatprep.subr.bf16.mxu0 0
    %692 = vmatpush1.bf16.msra.mxu0 %v563
    %693 = vmatprep.subr.bf16.mxu0 0
    %694 = vmatpush1.bf16.msra.mxu0 %v564
    %695 = vmatprep.subr.bf16.mxu0 0
    %696 = vmatpush1.bf16.msra.mxu0 %v565
    %697 = vmatprep.subr.bf16.mxu0 0
    %698 = vmatpush1.bf16.msra.mxu0 %v566
    %699 = vmatprep.subr.bf16.mxu0 0
    %700 = vmatpush1.bf16.msra.mxu0 %v679
    %701 = vmatprep.subr.bf16.mxu0 0
    %702 = vmatpush1.bf16.msra.mxu0 0
    %703 = vmatprep.subr.bf16.mxu0 0
    %704 = vmatpush1.bf16.msra.mxu0 0
    %705 = vmatprep.subr.bf16.mxu0 0
    %706 = vmatpush1.bf16.msra.mxu0 0
    %707 = vmatprep.subr.bf16.mxu0 0
    %708 = vmatpush1.bf16.msra.mxu0 0
    %709 = vmatprep.subr.bf16.mxu0 0
    %710 = vmatpush1.bf16.msra.mxu0 0
    %711 = vmatprep.subr.bf16.mxu0 0
    %712 = vmatpush1.bf16.msra.mxu0 0
    %713 = vmatprep.mubr.bf16.mxu0 %v579
    %714 = vmatmul.mubr.bf16.gmra.mrb[0].mxu0 %v424
    %v715 = vpop.f32.mrb[0].mxu0
    %v716 = vadd.f32 0.0, %v715
    %v717 = vpop.f32.mrb[0].mxu0
    %v718 = vpop.f32.mrb[0].mxu0
    %v719 = vadd.f32 0.0, %v718
    %v720 = vpop.f32.mrb[0].mxu0
    %721 = vmatprep.mubr.bf16.mxu0 %v582
    %722 = vmatmul.mubr.bf16.gmra.mrb[0].mxu0 %v426
    %v723 = vpop.f32.mrb[0].mxu0
    %v724 = vadd.f32 0.0, %v723
    %v725 = vpop.f32.mrb[0].mxu0
    %v726 = vpop.f32.mrb[0].mxu0
    %v727 = vadd.f32 0.0, %v726
    %v728 = vpop.f32.mrb[0].mxu0
    %729 = vmatprep.mubr.bf16.mxu0 %v585
    %730 = vmatmul.mubr.bf16.gmra.mrb[0].mxu0 %v428
    %v731 = vpop.f32.mrb[0].mxu0
    %v732 = vadd.f32 0.0, %v731
    %v733 = vpop.f32.mrb[0].mxu0
    %v734 = vpop.f32.mrb[0].mxu0
    %v735 = vadd.f32 0.0, %v734
    %v736 = vpop.f32.mrb[0].mxu0
    %737 = vmatprep.mubr.bf16.mxu0 %v588
    %738 = vmatmul.mubr.bf16.gmra.mrb[0].mxu0 %v430
    %v739 = vpop.f32.mrb[0].mxu0
    %v740 = vadd.f32 0.0, %v739
    %v741 = vpop.f32.mrb[0].mxu0
    %v742 = vpop.f32.mrb[0].mxu0
    %v743 = vadd.f32 0.0, %v742
    %v744 = vpop.f32.mrb[0].mxu0
    %745 = vmatprep.mubr.bf16.mxu0 %v591
    %746 = vmatmul.mubr.bf16.gmra.mrb[0].mxu0 %v432
    %v747 = vpop.f32.mrb[0].mxu0
    %v748 = vadd.f32 0.0, %v747
    %v749 = vpop.f32.mrb[0].mxu0
    %v750 = vpop.f32.mrb[0].mxu0
    %v751 = vadd.f32 0.0, %v750
    %v752 = vpop.f32.mrb[0].mxu0
    %753 = vmatprep.mubr.bf16.mxu0 %v594
    %754 = vmatmul.mubr.bf16.gmra.mrb[0].mxu0 %v434
    %v755 = vpop.f32.mrb[0].mxu0
    %v756 = vadd.f32 0.0, %v755
    %v757 = vpop.f32.mrb[0].mxu0
    %v758 = vpop.f32.mrb[0].mxu0
    %v759 = vadd.f32 0.0, %v758
    %v760 = vpop.f32.mrb[0].mxu0
    %761 = vmatprep.mubr.bf16.mxu0 %v597
    %762 = vmatmul.mubr.bf16.gmra.mrb[0].mxu0 %v436
    %v763 = vpop.f32.mrb[0].mxu0
    %v764 = vadd.f32 0.0, %v763
    %v765 = vpop.f32.mrb[0].mxu0
    %v766 = vpop.f32.mrb[0].mxu0
    %v767 = vadd.f32 0.0, %v766
    %v768 = vpop.f32.mrb[0].mxu0
    %769 = vmatprep.mubr.bf16.mxu0 %v600
    %770 = vmatmul.mubr.bf16.gmra.mrb[0].mxu0 %v438
    %v771 = vpop.f32.mrb[0].mxu0
    %v772 = vadd.f32 0.0, %v771
    %v773 = vpop.f32.mrb[0].mxu0
    %v774 = vpop.f32.mrb[0].mxu0
    %v775 = vadd.f32 0.0, %v774
    %v776 = vpop.f32.mrb[0].mxu0
    %777 = vmatprep.mubr.bf16.mxu0 %v603
    %778 = vmatmul.mubr.bf16.gmra.mrb[0].mxu0 %v440
    %v779 = vpop.f32.mrb[0].mxu0
    %v780 = vadd.f32 0.0, %v779
    %v781 = vpop.f32.mrb[0].mxu0
    %v782 = vpop.f32.mrb[0].mxu0
    %v783 = vadd.f32 0.0, %v782
    %v784 = vpop.f32.mrb[0].mxu0
    %785 = vmatprep.mubr.bf16.mxu0 %v606
    %786 = vmatmul.mubr.bf16.gmra.mrb[0].mxu0 %v442
    %v787 = vpop.f32.mrb[0].mxu0
    %v788 = vadd.f32 0.0, %v787
    %v789 = vpop.f32.mrb[0].mxu0
    %v790 = vpop.f32.mrb[0].mxu0
    %v791 = vadd.f32 0.0, %v790
    %v792 = vpop.f32.mrb[0].mxu0
    %793 = vmatprep.mubr.bf16.mxu0 %v609
    %794 = vmatmul.mubr.bf16.gmra.mrb[0].mxu0 %v444
    %v795 = vpop.f32.mrb[0].mxu0
    %v796 = vadd.f32 0.0, %v795
    %v797 = vpop.f32.mrb[0].mxu0
    %v798 = vpop.f32.mrb[0].mxu0
    %v799 = vadd.f32 0.0, %v798
    %v800 = vpop.f32.mrb[0].mxu0
    %801 = vmatprep.mubr.bf16.mxu0 %v612
    %802 = vmatmul.mubr.bf16.gmra.mrb[0].mxu0 %v446
    %v803 = vpop.f32.mrb[0].mxu0
    %v804 = vadd.f32 0.0, %v803
    %v805 = vpop.f32.mrb[0].mxu0
    %v806 = vpop.f32.mrb[0].mxu0
    %v807 = vadd.f32 0.0, %v806
    %v808 = vpop.f32.mrb[0].mxu0
    %809 = vmatprep.mubr.bf16.mxu0 %v615
    %810 = vmatmul.mubr.bf16.gmra.mrb[0].mxu0 %v448
    %v811 = vpop.f32.mrb[0].mxu0
    %v812 = vadd.f32 0.0, %v811
    %v813 = vpop.f32.mrb[0].mxu0
    %v814 = vpop.f32.mrb[0].mxu0
    %v815 = vadd.f32 0.0, %v814
    %v816 = vpop.f32.mrb[0].mxu0
    %817 = vmatprep.mubr.bf16.mxu0 %v618
    %818 = vmatmul.mubr.bf16.gmra.mrb[0].mxu0 %v450
    %v819 = vpop.f32.mrb[0].mxu0
    %v820 = vadd.f32 0.0, %v819
    %v821 = vpop.f32.mrb[0].mxu0
    %v822 = vpop.f32.mrb[0].mxu0
    %v823 = vadd.f32 0.0, %v822
    %v824 = vpop.f32.mrb[0].mxu0
    %825 = vmatprep.mubr.bf16.mxu0 %v621
    %826 = vmatmul.mubr.bf16.gmra.mrb[0].mxu0 %v452
    %v827 = vpop.f32.mrb[0].mxu0
    %v828 = vadd.f32 0.0, %v827
    %v829 = vpop.f32.mrb[0].mxu0
    %v830 = vpop.f32.mrb[0].mxu0
    %v831 = vadd.f32 0.0, %v830
    %v832 = vpop.f32.mrb[0].mxu0
    %833 = vmatprep.mubr.bf16.mxu0 %v624
    %834 = vmatmul.mubr.bf16.gmra.mrb[0].mxu0 %v454
    %v835 = vpop.f32.mrb[0].mxu0
    %v836 = vadd.f32 0.0, %v835
    %v837 = vpop.f32.mrb[0].mxu0
    %v838 = vpop.f32.mrb[0].mxu0
    %v839 = vadd.f32 0.0, %v838
    %v840 = vpop.f32.mrb[0].mxu0
    %841 = vmatprep.mubr.bf16.mxu0 %v627
    %842 = vmatmul.mubr.bf16.gmra.mrb[0].mxu0 %v456
    %v843 = vpop.f32.mrb[0].mxu0
    %v844 = vadd.f32 0.0, %v843
    %v845 = vpop.f32.mrb[0].mxu0
    %v846 = vpop.f32.mrb[0].mxu0
    %v847 = vadd.f32 0.0, %v846
    %v848 = vpop.f32.mrb[0].mxu0
    %849 = vmatprep.mubr.bf16.mxu0 %v630
    %850 = vmatmul.mubr.bf16.gmra.mrb[0].mxu0 %v458
    %v851 = vpop.f32.mrb[0].mxu0
    %v852 = vadd.f32 0.0, %v851
    %v853 = vpop.f32.mrb[0].mxu0
    %v854 = vpop.f32.mrb[0].mxu0
    %v855 = vadd.f32 0.0, %v854
    %v856 = vpop.f32.mrb[0].mxu0
    %857 = vmatprep.mubr.bf16.mxu0 %v633
    %858 = vmatmul.mubr.bf16.gmra.mrb[0].mxu0 %v460
    %v859 = vpop.f32.mrb[0].mxu0
    %v860 = vadd.f32 0.0, %v859
    %v861 = vpop.f32.mrb[0].mxu0
    %v862 = vpop.f32.mrb[0].mxu0
    %v863 = vadd.f32 0.0, %v862
    %v864 = vpop.f32.mrb[0].mxu0
    %865 = vmatprep.mubr.bf16.mxu0 %v636
    %866 = vmatmul.mubr.bf16.gmra.mrb[0].mxu0 %v462
    %v867 = vpop.f32.mrb[0].mxu0
    %v868 = vadd.f32 0.0, %v867
    %v869 = vpop.f32.mrb[0].mxu0
    %v870 = vpop.f32.mrb[0].mxu0
    %v871 = vadd.f32 0.0, %v870
    %v872 = vpop.f32.mrb[0].mxu0
    %873 = vmatprep.mubr.bf16.mxu0 %v639
    %874 = vmatmul.mubr.bf16.gmra.mrb[0].mxu0 %v464
    %v875 = vpop.f32.mrb[0].mxu0
    %v876 = vadd.f32 0.0, %v875
    %v877 = vpop.f32.mrb[0].mxu0
    %v878 = vpop.f32.mrb[0].mxu0
    %v879 = vadd.f32 0.0, %v878
    %v880 = vpop.f32.mrb[0].mxu0
    %881 = vmatprep.mubr.bf16.mxu0 %v642
    %882 = vmatmul.mubr.bf16.gmra.mrb[0].mxu0 %v466
    %v883 = vpop.f32.mrb[0].mxu0
    %v884 = vadd.f32 0.0, %v883
    %v885 = vpop.f32.mrb[0].mxu0
    %v886 = vpop.f32.mrb[0].mxu0
    %v887 = vadd.f32 0.0, %v886
    %v888 = vpop.f32.mrb[0].mxu0
    %889 = vmatprep.mubr.bf16.mxu0 %v645
    %890 = vmatmul.mubr.bf16.gmra.mrb[0].mxu0 %v468
    %v891 = vpop.f32.mrb[0].mxu0
    %v892 = vadd.f32 0.0, %v891
    %v893 = vpop.f32.mrb[0].mxu0
    %v894 = vpop.f32.mrb[0].mxu0
    %v895 = vadd.f32 0.0, %v894
    %v896 = vpop.f32.mrb[0].mxu0
    %897 = vmatprep.mubr.bf16.mxu0 %v648
    %898 = vmatmul.mubr.bf16.gmra.mrb[0].mxu0 %v470
    %v899 = vpop.f32.mrb[0].mxu0
    %v900 = vadd.f32 0.0, %v899
    %v901 = vpop.f32.mrb[0].mxu0
    %v902 = vpop.f32.mrb[0].mxu0
    %v903 = vadd.f32 0.0, %v902
    %v904 = vpop.f32.mrb[0].mxu0
    %905 = vmatprep.mubr.bf16.mxu0 %v651
    %906 = vmatmul.mubr.bf16.gmra.mrb[0].mxu0 %v472
    %v907 = vpop.f32.mrb[0].mxu0
    %v908 = vadd.f32 0.0, %v907
    %v909 = vpop.f32.mrb[0].mxu0
    %v910 = vpop.f32.mrb[0].mxu0
    %v911 = vadd.f32 0.0, %v910
    %v912 = vpop.f32.mrb[0].mxu0
    %913 = vmatprep.mubr.bf16.mxu0 %v654
    %914 = vmatmul.mubr.bf16.gmra.mrb[0].mxu0 %v474
    %v915 = vpop.f32.mrb[0].mxu0
    %v916 = vadd.f32 0.0, %v915
    %v917 = vpop.f32.mrb[0].mxu0
    %v918 = vpop.f32.mrb[0].mxu0
    %v919 = vadd.f32 0.0, %v918
    %v920 = vpop.f32.mrb[0].mxu0
    %921 = vmatprep.mubr.bf16.mxu0 %v657
    %922 = vmatmul.mubr.bf16.gmra.mrb[0].mxu0 %v476
    %v923 = vpop.f32.mrb[0].mxu0
    %v924 = vadd.f32 0.0, %v923
    %v925 = vpop.f32.mrb[0].mxu0
    %v926 = vpop.f32.mrb[0].mxu0
    %v927 = vadd.f32 0.0, %v926
    %v928 = vpop.f32.mrb[0].mxu0
    %929 = vmatprep.mubr.bf16.mxu0 %v660
    %930 = vmatmul.mubr.bf16.gmra.mrb[0].mxu0 %v478
    %v931 = vpop.f32.mrb[0].mxu0
    %v932 = vadd.f32 0.0, %v931
    %v933 = vpop.f32.mrb[0].mxu0
    %v934 = vpop.f32.mrb[0].mxu0
    %v935 = vadd.f32 0.0, %v934
    %v936 = vpop.f32.mrb[0].mxu0
    %937 = vmatprep.mubr.bf16.mxu0 %v663
    %938 = vmatmul.mubr.bf16.gmra.mrb[0].mxu0 %v480
    %v939 = vpop.f32.mrb[0].mxu0
    %v940 = vadd.f32 0.0, %v939
    %v941 = vpop.f32.mrb[0].mxu0
    %v942 = vpop.f32.mrb[0].mxu0
    %v943 = vadd.f32 0.0, %v942
    %v944 = vpop.f32.mrb[0].mxu0
    %945 = vmatprep.mubr.bf16.mxu0 %v666
    %946 = vmatmul.mubr.bf16.gmra.mrb[0].mxu0 %v482
    %v947 = vpop.f32.mrb[0].mxu0
    %v948 = vadd.f32 0.0, %v947
    %v949 = vpop.f32.mrb[0].mxu0
    %v950 = vpop.f32.mrb[0].mxu0
    %v951 = vadd.f32 0.0, %v950
    %v952 = vpop.f32.mrb[0].mxu0
    %953 = vmatprep.mubr.bf16.mxu0 %v669
    %954 = vmatmul.mubr.bf16.gmra.mrb[0].mxu0 %v484
    %v955 = vpop.f32.mrb[0].mxu0
    %v956 = vadd.f32 0.0, %v955
    %v957 = vpop.f32.mrb[0].mxu0
    %v958 = vpop.f32.mrb[0].mxu0
    %v959 = vadd.f32 0.0, %v958
    %v960 = vpop.f32.mrb[0].mxu0
    %961 = vmatprep.mubr.bf16.mxu0 %v672
    %962 = vmatmul.mubr.bf16.gmra.mrb[0].mxu0 %v486
    %v963 = vpop.f32.mrb[0].mxu0
    %v964 = vadd.f32 0.0, %v963
    %v965 = vpop.f32.mrb[0].mxu0
    %v966 = vpop.f32.mrb[0].mxu0
    %v967 = vadd.f32 0.0, %v966
    %v968 = vpop.f32.mrb[0].mxu0
    %969 = vdwg.mxu0
    %v970 = vadd.f32 %v85, %v716
    %v971 = vadd.f32 %v86, %v719
    %v972 = vadd.f32 %v87, %v724
    %v973 = vadd.f32 %v88, %v727
    %v974 = vadd.f32 %v89, %v732
    %v975 = vadd.f32 %v90, %v735
    %v976 = vadd.f32 %v91, %v740
    %v977 = vadd.f32 %v92, %v743
    %v978 = vadd.f32 %v93, %v748
    %v979 = vadd.f32 %v94, %v751
    %v980 = vadd.f32 %v95, %v756
    %v981 = vadd.f32 %v96, %v759
    %v982 = vadd.f32 %v97, %v764
    %v983 = vadd.f32 %v98, %v767
    %v984 = vadd.f32 %v99, %v772
    %v985 = vadd.f32 %v100, %v775
    %v986 = vadd.f32 %v101, %v780
    %v987 = vadd.f32 %v102, %v783
    %v988 = vadd.f32 %v103, %v788
    %v989 = vadd.f32 %v104, %v791
    %v990 = vadd.f32 %v105, %v796
    %v991 = vadd.f32 %v106, %v799
    %v992 = vadd.f32 %v107, %v804
    %v993 = vadd.f32 %v108, %v807
    %v994 = vadd.f32 %v109, %v812
    %v995 = vadd.f32 %v110, %v815
    %v996 = vadd.f32 %v111, %v820
    %v997 = vadd.f32 %v112, %v823
    %v998 = vadd.f32 %v113, %v828
    %v999 = vadd.f32 %v114, %v831
    %v1000 = vadd.f32 %v115, %v836
    %v1001 = vadd.f32 %v116, %v839
    %v1002 = vadd.f32 %v117, %v844
    %v1003 = vadd.f32 %v118, %v847
    %v1004 = vadd.f32 %v119, %v852
    %v1005 = vadd.f32 %v120, %v855
    %v1006 = vadd.f32 %v121, %v860
    %v1007 = vadd.f32 %v122, %v863
    %v1008 = vadd.f32 %v123, %v868
    %v1009 = vadd.f32 %v124, %v871
    %v1010 = vadd.f32 %v125, %v876
    %v1011 = vadd.f32 %v126, %v879
    %v1012 = vadd.f32 %v127, %v884
    %v1013 = vadd.f32 %v128, %v887
    %v1014 = vadd.f32 %v129, %v892
    %v1015 = vadd.f32 %v130, %v895
    %v1016 = vadd.f32 %v131, %v900
    %v1017 = vadd.f32 %v132, %v903
    %v1018 = vadd.f32 %v133, %v908
    %v1019 = vadd.f32 %v134, %v911
    %v1020 = vadd.f32 %v135, %v916
    %v1021 = vadd.f32 %v136, %v919
    %v1022 = vadd.f32 %v137, %v924
    %v1023 = vadd.f32 %v138, %v927
    %v1024 = vadd.f32 %v139, %v932
    %v1025 = vadd.f32 %v140, %v935
    %v1026 = vadd.f32 %v141, %v940
    %v1027 = vadd.f32 %v142, %v943
    %v1028 = vadd.f32 %v143, %v948
    %v1029 = vadd.f32 %v144, %v951
    %v1030 = vadd.f32 %v145, %v956
    %v1031 = vadd.f32 %v146, %v959
    %v1032 = vadd.f32 %v147, %v964
    %v1033 = vadd.f32 %v148, %v967
    %1034 = vst [vmem:[#allocation2] sm:$0xff] %v970
    %1035 = vst [vmem:[#allocation2 + $0x8] sm:$0xff] %v971
    %1036 = vst [vmem:[#allocation2 + $0x10] sm:$0xff] %v972
    %1037 = vst [vmem:[#allocation2 + $0x18] sm:$0xff] %v973
    %1038 = vst [vmem:[#allocation2 + $0x20] sm:$0xff] %v974
    %1039 = vst [vmem:[#allocation2 + $0x28] sm:$0xff] %v975
    %1040 = vst [vmem:[#allocation2 + $0x30] sm:$0xff] %v976
    %1041 = vst [vmem:[#allocation2 + $0x38] sm:$0xff] %v977
    %1042 = vst [vmem:[#allocation2 + $0x40] sm:$0xff] %v978
    %1043 = vst [vmem:[#allocation2 + $0x48] sm:$0xff] %v979
    %1044 = vst [vmem:[#allocation2 + $0x50] sm:$0xff] %v980
    %1045 = vst [vmem:[#allocation2 + $0x58] sm:$0xff] %v981
    %1046 = vst [vmem:[#allocation2 + $0x60] sm:$0xff] %v982
    %1047 = vst [vmem:[#allocation2 + $0x68] sm:$0xff] %v983
    %1048 = vst [vmem:[#allocation2 + $0x70] sm:$0xff] %v984
    %1049 = vst [vmem:[#allocation2 + $0x78] sm:$0xff] %v985
    %1050 = vst [vmem:[#allocation2 + $0x80] sm:$0xff] %v986
    %1051 = vst [vmem:[#allocation2 + $0x88] sm:$0xff] %v987
    %1052 = vst [vmem:[#allocation2 + $0x90] sm:$0xff] %v988
    %1053 = vst [vmem:[#allocation2 + $0x98] sm:$0xff] %v989
    %1054 = vst [vmem:[#allocation2 + $0xa0] sm:$0xff] %v990
    %1055 = vst [vmem:[#allocation2 + $0xa8] sm:$0xff] %v991
    %1056 = vst [vmem:[#allocation2 + $0xb0] sm:$0xff] %v992
    %1057 = vst [vmem:[#allocation2 + $0xb8] sm:$0xff] %v993
    %1058 = vst [vmem:[#allocation2 + $0xc0] sm:$0xff] %v994
    %1059 = vst [vmem:[#allocation2 + $0xc8] sm:$0xff] %v995
    %1060 = vst [vmem:[#allocation2 + $0xd0] sm:$0xff] %v996
    %1061 = vst [vmem:[#allocation2 + $0xd8] sm:$0xff] %v997
    %1062 = vst [vmem:[#allocation2 + $0xe0] sm:$0xff] %v998
    %1063 = vst [vmem:[#allocation2 + $0xe8] sm:$0xff] %v999
    %1064 = vst [vmem:[#allocation2 + $0xf0] sm:$0xff] %v1000
    %1065 = vst [vmem:[#allocation2 + $0xf8] sm:$0xff] %v1001
    %1066 = vst [vmem:[#allocation2 + $0x100] sm:$0xff] %v1002
    %1067 = vst [vmem:[#allocation2 + $0x108] sm:$0xff] %v1003
    %1068 = vst [vmem:[#allocation2 + $0x110] sm:$0xff] %v1004
    %1069 = vst [vmem:[#allocation2 + $0x118] sm:$0xff] %v1005
    %1070 = vst [vmem:[#allocation2 + $0x120] sm:$0xff] %v1006
    %1071 = vst [vmem:[#allocation2 + $0x128] sm:$0xff] %v1007
    %1072 = vst [vmem:[#allocation2 + $0x130] sm:$0xff] %v1008
    %1073 = vst [vmem:[#allocation2 + $0x138] sm:$0xff] %v1009
    %1074 = vst [vmem:[#allocation2 + $0x140] sm:$0xff] %v1010
    %1075 = vst [vmem:[#allocation2 + $0x148] sm:$0xff] %v1011
    %1076 = vst [vmem:[#allocation2 + $0x150] sm:$0xff] %v1012
    %1077 = vst [vmem:[#allocation2 + $0x158] sm:$0xff] %v1013
    %1078 = vst [vmem:[#allocation2 + $0x160] sm:$0xff] %v1014
    %1079 = vst [vmem:[#allocation2 + $0x168] sm:$0xff] %v1015
    %1080 = vst [vmem:[#allocation2 + $0x170] sm:$0xff] %v1016
    %1081 = vst [vmem:[#allocation2 + $0x178] sm:$0xff] %v1017
    %1082 = vst [vmem:[#allocation2 + $0x180] sm:$0xff] %v1018
    %1083 = vst [vmem:[#allocation2 + $0x188] sm:$0xff] %v1019
    %1084 = vst [vmem:[#allocation2 + $0x190] sm:$0xff] %v1020
    %1085 = vst [vmem:[#allocation2 + $0x198] sm:$0xff] %v1021
    %1086 = vst [vmem:[#allocation2 + $0x1a0] sm:$0xff] %v1022
    %1087 = vst [vmem:[#allocation2 + $0x1a8] sm:$0xff] %v1023
    %1088 = vst [vmem:[#allocation2 + $0x1b0] sm:$0xff] %v1024
    %1089 = vst [vmem:[#allocation2 + $0x1b8] sm:$0xff] %v1025
    %1090 = vst [vmem:[#allocation2 + $0x1c0] sm:$0xff] %v1026
    %1091 = vst [vmem:[#allocation2 + $0x1c8] sm:$0xff] %v1027
    %1092 = vst [vmem:[#allocation2 + $0x1d0] sm:$0xff] %v1028
    %1093 = vst [vmem:[#allocation2 + $0x1d8] sm:$0xff] %v1029
    %1094 = vst [vmem:[#allocation2 + $0x1e0] sm:$0xff] %v1030
    %1095 = vst [vmem:[#allocation2 + $0x1e8] sm:$0xff] %v1031
    %1096 = vst [vmem:[#allocation2 + $0x1f0] sm:$0xff] %v1032
    %1097 = vst [vmem:[#allocation2 + $0x1f8] sm:$0xff] %v1033
    // Predicated region
    $region14: #{tpu_custom_call.1} parent=1 // pred_check
      %p1098 = pneg %p17
    $region15: #{tpu_custom_call.1} parent=1 // pred_check_branch
      %1100 = sbr.rel (%p1098) target = $region17
    $region16: #{tpu_custom_call.1} parent=1 // pred_region
      %1101 = vst [vmem:[#allocation4] sm:$0x1] 0.0
      %1102 = vst [vmem:[#allocation6] sm:$0x1] 0.0
      %v1103 = vld [vmem:[#allocation2] sm:$0xff]
      %v1104 = vld [vmem:[#allocation2 + $0x8] sm:$0xff]
      %v1105 = vld [vmem:[#allocation2 + $0x10] sm:$0xff]
      %v1106 = vld [vmem:[#allocation2 + $0x18] sm:$0xff]
      %v1107 = vld [vmem:[#allocation2 + $0x20] sm:$0xff]
      %v1108 = vld [vmem:[#allocation2 + $0x28] sm:$0xff]
      %v1109 = vld [vmem:[#allocation2 + $0x30] sm:$0xff]
      %v1110 = vld [vmem:[#allocation2 + $0x38] sm:$0xff]
      %v1111 = vld [vmem:[#allocation2 + $0x40] sm:$0xff]
      %v1112 = vld [vmem:[#allocation2 + $0x48] sm:$0xff]
      %v1113 = vld [vmem:[#allocation2 + $0x50] sm:$0xff]
      %v1114 = vld [vmem:[#allocation2 + $0x58] sm:$0xff]
      %v1115 = vld [vmem:[#allocation2 + $0x60] sm:$0xff]
      %v1116 = vld [vmem:[#allocation2 + $0x68] sm:$0xff]
      %v1117 = vld [vmem:[#allocation2 + $0x70] sm:$0xff]
      %v1118 = vld [vmem:[#allocation2 + $0x78] sm:$0xff]
      %v1119 = vld [vmem:[#allocation2 + $0x80] sm:$0xff]
      %v1120 = vld [vmem:[#allocation2 + $0x88] sm:$0xff]
      %v1121 = vld [vmem:[#allocation2 + $0x90] sm:$0xff]
      %v1122 = vld [vmem:[#allocation2 + $0x98] sm:$0xff]
      %v1123 = vld [vmem:[#allocation2 + $0xa0] sm:$0xff]
      %v1124 = vld [vmem:[#allocation2 + $0xa8] sm:$0xff]
      %v1125 = vld [vmem:[#allocation2 + $0xb0] sm:$0xff]
      %v1126 = vld [vmem:[#allocation2 + $0xb8] sm:$0xff]
      %v1127 = vld [vmem:[#allocation2 + $0xc0] sm:$0xff]
      %v1128 = vld [vmem:[#allocation2 + $0xc8] sm:$0xff]
      %v1129 = vld [vmem:[#allocation2 + $0xd0] sm:$0xff]
      %v1130 = vld [vmem:[#allocation2 + $0xd8] sm:$0xff]
      %v1131 = vld [vmem:[#allocation2 + $0xe0] sm:$0xff]
      %v1132 = vld [vmem:[#allocation2 + $0xe8] sm:$0xff]
      %v1133 = vld [vmem:[#allocation2 + $0xf0] sm:$0xff]
      %v1134 = vld [vmem:[#allocation2 + $0xf8] sm:$0xff]
      %v1135 = vld [vmem:[#allocation2 + $0x100] sm:$0xff]
      %v1136 = vld [vmem:[#allocation2 + $0x108] sm:$0xff]
      %v1137 = vld [vmem:[#allocation2 + $0x110] sm:$0xff]
      %v1138 = vld [vmem:[#allocation2 + $0x118] sm:$0xff]
      %v1139 = vld [vmem:[#allocation2 + $0x120] sm:$0xff]
      %v1140 = vld [vmem:[#allocation2 + $0x128] sm:$0xff]
      %v1141 = vld [vmem:[#allocation2 + $0x130] sm:$0xff]
      %v1142 = vld [vmem:[#allocation2 + $0x138] sm:$0xff]
      %v1143 = vld [vmem:[#allocation2 + $0x140] sm:$0xff]
      %v1144 = vld [vmem:[#allocation2 + $0x148] sm:$0xff]
      %v1145 = vld [vmem:[#allocation2 + $0x150] sm:$0xff]
      %v1146 = vld [vmem:[#allocation2 + $0x158] sm:$0xff]
      %v1147 = vld [vmem:[#allocation2 + $0x160] sm:$0xff]
      %v1148 = vld [vmem:[#allocation2 + $0x168] sm:$0xff]
      %v1149 = vld [vmem:[#allocation2 + $0x170] sm:$0xff]
      %v1150 = vld [vmem:[#allocation2 + $0x178] sm:$0xff]
      %v1151 = vld [vmem:[#allocation2 + $0x180] sm:$0xff]
      %v1152 = vld [vmem:[#allocation2 + $0x188] sm:$0xff]
      %v1153 = vld [vmem:[#allocation2 + $0x190] sm:$0xff]
      %v1154 = vld [vmem:[#allocation2 + $0x198] sm:$0xff]
      %v1155 = vld [vmem:[#allocation2 + $0x1a0] sm:$0xff]
      %v1156 = vld [vmem:[#allocation2 + $0x1a8] sm:$0xff]
      %v1157 = vld [vmem:[#allocation2 + $0x1b0] sm:$0xff]
      %v1158 = vld [vmem:[#allocation2 + $0x1b8] sm:$0xff]
      %v1159 = vld [vmem:[#allocation2 + $0x1c0] sm:$0xff]
      %v1160 = vld [vmem:[#allocation2 + $0x1c8] sm:$0xff]
      %v1161 = vld [vmem:[#allocation2 + $0x1d0] sm:$0xff]
      %v1162 = vld [vmem:[#allocation2 + $0x1d8] sm:$0xff]
      %v1163 = vld [vmem:[#allocation2 + $0x1e0] sm:$0xff]
      %v1164 = vld [vmem:[#allocation2 + $0x1e8] sm:$0xff]
      %v1165 = vld [vmem:[#allocation2 + $0x1f0] sm:$0xff]
      %v1166 = vld [vmem:[#allocation2 + $0x1f8] sm:$0xff]
      %v1167 = vadd.f32 %v1103, %v1104
      %v1168 = vadd.f32 %v1167, %v1105
      %v1169 = vadd.f32 %v1168, %v1106
      %v1170 = vadd.f32 %v1169, %v1107
      %v1171 = vadd.f32 %v1170, %v1108
      %v1172 = vadd.f32 %v1171, %v1109
      %v1173 = vadd.f32 %v1172, %v1110
      %v1174 = vadd.f32 %v1173, %v1111
      %v1175 = vadd.f32 %v1174, %v1112
      %v1176 = vadd.f32 %v1175, %v1113
      %v1177 = vadd.f32 %v1176, %v1114
      %v1178 = vadd.f32 %v1177, %v1115
      %v1179 = vadd.f32 %v1178, %v1116
      %v1180 = vadd.f32 %v1179, %v1117
      %v1181 = vadd.f32 %v1180, %v1118
      %v1182 = vadd.f32 %v1181, %v1119
      %v1183 = vadd.f32 %v1182, %v1120
      %v1184 = vadd.f32 %v1183, %v1121
      %v1185 = vadd.f32 %v1184, %v1122
      %v1186 = vadd.f32 %v1185, %v1123
      %v1187 = vadd.f32 %v1186, %v1124
      %v1188 = vadd.f32 %v1187, %v1125
      %v1189 = vadd.f32 %v1188, %v1126
      %v1190 = vadd.f32 %v1189, %v1127
      %v1191 = vadd.f32 %v1190, %v1128
      %v1192 = vadd.f32 %v1191, %v1129
      %v1193 = vadd.f32 %v1192, %v1130
      %v1194 = vadd.f32 %v1193, %v1131
      %v1195 = vadd.f32 %v1194, %v1132
      %v1196 = vadd.f32 %v1195, %v1133
      %v1197 = vadd.f32 %v1196, %v1134
      %v1198 = vadd.f32 %v1197, %v1135
      %v1199 = vadd.f32 %v1198, %v1136
      %v1200 = vadd.f32 %v1199, %v1137
      %v1201 = vadd.f32 %v1200, %v1138
      %v1202 = vadd.f32 %v1201, %v1139
      %v1203 = vadd.f32 %v1202, %v1140
      %v1204 = vadd.f32 %v1203, %v1141
      %v1205 = vadd.f32 %v1204, %v1142
      %v1206 = vadd.f32 %v1205, %v1143
      %v1207 = vadd.f32 %v1206, %v1144
      %v1208 = vadd.f32 %v1207, %v1145
      %v1209 = vadd.f32 %v1208, %v1146
      %v1210 = vadd.f32 %v1209, %v1147
      %v1211 = vadd.f32 %v1210, %v1148
      %v1212 = vadd.f32 %v1211, %v1149
      %v1213 = vadd.f32 %v1212, %v1150
      %v1214 = vadd.f32 %v1213, %v1151
      %v1215 = vadd.f32 %v1214, %v1152
      %v1216 = vadd.f32 %v1215, %v1153
      %v1217 = vadd.f32 %v1216, %v1154
      %v1218 = vadd.f32 %v1217, %v1155
      %v1219 = vadd.f32 %v1218, %v1156
      %v1220 = vadd.f32 %v1219, %v1157
      %v1221 = vadd.f32 %v1220, %v1158
      %v1222 = vadd.f32 %v1221, %v1159
      %v1223 = vadd.f32 %v1222, %v1160
      %v1224 = vadd.f32 %v1223, %v1161
      %v1225 = vadd.f32 %v1224, %v1162
      %v1226 = vadd.f32 %v1225, %v1163
      %v1227 = vadd.f32 %v1226, %v1164
      %v1228 = vadd.f32 %v1227, %v1165
      %v1229 = vadd.f32 %v1228, %v1166
      %v1230 = vrot.slane %v1229, 4
      %v1231 = vadd.f32 %v1229, %v1230
      %v1232 = vrot.slane %v1231, 2
      %v1233 = vadd.f32 %v1231, %v1232
      %v1234 = vrot.slane %v1233, 1
      %v1235 = vadd.f32 %v1233, %v1234
      %1236 = vst [vmem:[#allocation4] sm:$0x1] %v1235
      %v1237 = vmul.f32 %v1103, %v1103
      %v1238 = vmul.f32 %v1104, %v1104
      %v1239 = vmul.f32 %v1105, %v1105
      %v1240 = vmul.f32 %v1106, %v1106
      %v1241 = vmul.f32 %v1107, %v1107
      %v1242 = vmul.f32 %v1108, %v1108
      %v1243 = vmul.f32 %v1109, %v1109
      %v1244 = vmul.f32 %v1110, %v1110
      %v1245 = vmul.f32 %v1111, %v1111
      %v1246 = vmul.f32 %v1112, %v1112
      %v1247 = vmul.f32 %v1113, %v1113
      %v1248 = vmul.f32 %v1114, %v1114
      %v1249 = vmul.f32 %v1115, %v1115
      %v1250 = vmul.f32 %v1116, %v1116
      %v1251 = vmul.f32 %v1117, %v1117
      %v1252 = vmul.f32 %v1118, %v1118
      %v1253 = vmul.f32 %v1119, %v1119
      %v1254 = vmul.f32 %v1120, %v1120
      %v1255 = vmul.f32 %v1121, %v1121
      %v1256 = vmul.f32 %v1122, %v1122
      %v1257 = vmul.f32 %v1123, %v1123
      %v1258 = vmul.f32 %v1124, %v1124
      %v1259 = vmul.f32 %v1125, %v1125
      %v1260 = vmul.f32 %v1126, %v1126
      %v1261 = vmul.f32 %v1127, %v1127
      %v1262 = vmul.f32 %v1128, %v1128
      %v1263 = vmul.f32 %v1129, %v1129
      %v1264 = vmul.f32 %v1130, %v1130
      %v1265 = vmul.f32 %v1131, %v1131
      %v1266 = vmul.f32 %v1132, %v1132
      %v1267 = vmul.f32 %v1133, %v1133
      %v1268 = vmul.f32 %v1134, %v1134
      %v1269 = vmul.f32 %v1135, %v1135
      %v1270 = vmul.f32 %v1136, %v1136
      %v1271 = vmul.f32 %v1137, %v1137
      %v1272 = vmul.f32 %v1138, %v1138
      %v1273 = vmul.f32 %v1139, %v1139
      %v1274 = vmul.f32 %v1140, %v1140
      %v1275 = vmul.f32 %v1141, %v1141
      %v1276 = vmul.f32 %v1142, %v1142
      %v1277 = vmul.f32 %v1143, %v1143
      %v1278 = vmul.f32 %v1144, %v1144
      %v1279 = vmul.f32 %v1145, %v1145
      %v1280 = vmul.f32 %v1146, %v1146
      %v1281 = vmul.f32 %v1147, %v1147
      %v1282 = vmul.f32 %v1148, %v1148
      %v1283 = vmul.f32 %v1149, %v1149
      %v1284 = vmul.f32 %v1150, %v1150
      %v1285 = vmul.f32 %v1151, %v1151
      %v1286 = vmul.f32 %v1152, %v1152
      %v1287 = vmul.f32 %v1153, %v1153
      %v1288 = vmul.f32 %v1154, %v1154
      %v1289 = vmul.f32 %v1155, %v1155
      %v1290 = vmul.f32 %v1156, %v1156
      %v1291 = vmul.f32 %v1157, %v1157
      %v1292 = vmul.f32 %v1158, %v1158
      %v1293 = vmul.f32 %v1159, %v1159
      %v1294 = vmul.f32 %v1160, %v1160
      %v1295 = vmul.f32 %v1161, %v1161
      %v1296 = vmul.f32 %v1162, %v1162
      %v1297 = vmul.f32 %v1163, %v1163
      %v1298 = vmul.f32 %v1164, %v1164
      %v1299 = vmul.f32 %v1165, %v1165
      %v1300 = vmul.f32 %v1166, %v1166
      %v1301 = vadd.f32 %v1237, %v1238
      %v1302 = vadd.f32 %v1301, %v1239
      %v1303 = vadd.f32 %v1302, %v1240
      %v1304 = vadd.f32 %v1303, %v1241
      %v1305 = vadd.f32 %v1304, %v1242
      %v1306 = vadd.f32 %v1305, %v1243
      %v1307 = vadd.f32 %v1306, %v1244
      %v1308 = vadd.f32 %v1307, %v1245
      %v1309 = vadd.f32 %v1308, %v1246
      %v1310 = vadd.f32 %v1309, %v1247
      %v1311 = vadd.f32 %v1310, %v1248
      %v1312 = vadd.f32 %v1311, %v1249
      %v1313 = vadd.f32 %v1312, %v1250
      %v1314 = vadd.f32 %v1313, %v1251
      %v1315 = vadd.f32 %v1314, %v1252
      %v1316 = vadd.f32 %v1315, %v1253
      %v1317 = vadd.f32 %v1316, %v1254
      %v1318 = vadd.f32 %v1317, %v1255
      %v1319 = vadd.f32 %v1318, %v1256
      %v1320 = vadd.f32 %v1319, %v1257
      %v1321 = vadd.f32 %v1320, %v1258
      %v1322 = vadd.f32 %v1321, %v1259
      %v1323 = vadd.f32 %v1322, %v1260
      %v1324 = vadd.f32 %v1323, %v1261
      %v1325 = vadd.f32 %v1324, %v1262
      %v1326 = vadd.f32 %v1325, %v1263
      %v1327 = vadd.f32 %v1326, %v1264
      %v1328 = vadd.f32 %v1327, %v1265
      %v1329 = vadd.f32 %v1328, %v1266
      %v1330 = vadd.f32 %v1329, %v1267
      %v1331 = vadd.f32 %v1330, %v1268
      %v1332 = vadd.f32 %v1331, %v1269
      %v1333 = vadd.f32 %v1332, %v1270
      %v1334 = vadd.f32 %v1333, %v1271
      %v1335 = vadd.f32 %v1334, %v1272
      %v1336 = vadd.f32 %v1335, %v1273
      %v1337 = vadd.f32 %v1336, %v1274
      %v1338 = vadd.f32 %v1337, %v1275
      %v1339 = vadd.f32 %v1338, %v1276
      %v1340 = vadd.f32 %v1339, %v1277
      %v1341 = vadd.f32 %v1340, %v1278
      %v1342 = vadd.f32 %v1341, %v1279
      %v1343 = vadd.f32 %v1342, %v1280
      %v1344 = vadd.f32 %v1343, %v1281
      %v1345 = vadd.f32 %v1344, %v1282
      %v1346 = vadd.f32 %v1345, %v1283
      %v1347 = vadd.f32 %v1346, %v1284
      %v1348 = vadd.f32 %v1347, %v1285
      %v1349 = vadd.f32 %v1348, %v1286
      %v1350 = vadd.f32 %v1349, %v1287
      %v1351 = vadd.f32 %v1350, %v1288
      %v1352 = vadd.f32 %v1351, %v1289
      %v1353 = vadd.f32 %v1352, %v1290
      %v1354 = vadd.f32 %v1353, %v1291
      %v1355 = vadd.f32 %v1354, %v1292
      %v1356 = vadd.f32 %v1355, %v1293
      %v1357 = vadd.f32 %v1356, %v1294
      %v1358 = vadd.f32 %v1357, %v1295
      %v1359 = vadd.f32 %v1358, %v1296
      %v1360 = vadd.f32 %v1359, %v1297
      %v1361 = vadd.f32 %v1360, %v1298
      %v1362 = vadd.f32 %v1361, %v1299
      %v1363 = vadd.f32 %v1362, %v1300
      %v1364 = vrot.slane %v1363, 4
      %v1365 = vadd.f32 %v1363, %v1364
      %v1366 = vrot.slane %v1365, 2
      %v1367 = vadd.f32 %v1365, %v1366
      %v1368 = vrot.slane %v1367, 1
      %v1369 = vadd.f32 %v1367, %v1368
      %1370 = vst [vmem:[#allocation6] sm:$0x1] %v1369
    $region17: #{tpu_custom_call.1} parent=1 // pred_fallthru
      _
    // Predicated region
    $region18: #{tpu_custom_call.1} parent=1 // pred_check
      _
    $region19: #{tpu_custom_call.1} parent=1 // pred_check_branch
      %1372 = sbr.rel (0) target = $region21
    $region20: #{tpu_custom_call.1} parent=1 // pred_region
      %s1374 = ssub.s32 8192, 8192
      %1375 = vsyncadd [#allocation3], %s1374
      %s1376 = sshll.u32 [#allocation2], 4
      %s1377 = int_to_ptr.vmem [resolvable:$true] %s1376
      %1382 = dma.vmem_to_hbm [thread:$0]  %s1377, 8192, %s2, [#allocation3], 128, 128, 8
    $region21: #{tpu_custom_call.1} parent=1 // pred_fallthru
      _
    // Predicated region
    $region22: #{tpu_custom_call.1} parent=1 // pred_check
      _
    $region23: #{tpu_custom_call.1} parent=1 // pred_check_branch
      %1384 = sbr.rel (0) target = $region25
    $region24: #{tpu_custom_call.1} parent=1 // pred_region
      %s1386 = ssub.s32 16, 16
      %1387 = vsyncadd [#allocation5], %s1386
      %s1389 = sshll.u32 [#allocation4], 4
      %s1390 = int_to_ptr.vmem [resolvable:$true] %s1389
      %1392 = dma.vmem_to_hbm [thread:$0]  %s1390, 16, %s3, [#allocation5]
    $region25: #{tpu_custom_call.1} parent=1 // pred_fallthru
      _
    // Predicated region
    $region26: #{tpu_custom_call.1} parent=1 // pred_check
      _
    $region27: #{tpu_custom_call.1} parent=1 // pred_check_branch
      %1394 = sbr.rel (0) target = $region29
    $region28: #{tpu_custom_call.1} parent=1 // pred_region
      %s1396 = ssub.s32 16, 16
      %1397 = vsyncadd [#allocation5], %s1396
      %s1399 = sshll.u32 [#allocation6], 4
      %s1400 = int_to_ptr.vmem [resolvable:$true] %s1399
      %1402 = dma.vmem_to_hbm [thread:$0]  %s1400, 16, %s4, [#allocation5]
    $region29: #{tpu_custom_call.1} parent=1 // pred_fallthru
      _
    // Predicated region
    $region30: #{tpu_custom_call.1} parent=1 // pred_check
      _
    $region31: #{tpu_custom_call.1} parent=1 // pred_check_branch
      %1404 = sbr.rel (0) target = $region33
    $region32: #{tpu_custom_call.1} parent=1 // pred_region
      %1405 = dma.done [#allocation3], 8192
    $region33: #{tpu_custom_call.1} parent=1 // pred_fallthru
      _
    // Predicated region
    $region34: #{tpu_custom_call.1} parent=1 // pred_check
      _
    $region35: #{tpu_custom_call.1} parent=1 // pred_check_branch
      %1407 = sbr.rel (0) target = $region37
    $region36: #{tpu_custom_call.1} parent=1 // pred_region
      %1408 = dma.done [#allocation5], 16
    $region37: #{tpu_custom_call.1} parent=1 // pred_fallthru
      _
    // Predicated region
    $region38: #{tpu_custom_call.1} parent=1 // pred_check
      _
    $region39: #{tpu_custom_call.1} parent=1 // pred_check_branch
      %1410 = sbr.rel (0) target = $region41
    $region40: #{tpu_custom_call.1} parent=1 // pred_region
      %1411 = dma.done [#allocation5], 16
    $region41: #{tpu_custom_call.1} parent=1 // pred_fallthru
      _
    %1412 = vsyncpa [#allocation3], 1
    %1413 = vsyncpa [#allocation5], 1

</llo_original>
